<compile_context>
chip_gen: v6e
topology: v6e:2x2x1
jax: 0.10.0
libtpu: 0.0.40
codegen_flags: <defaults>
</compile_context>

<pallas_src>
import numpy as np
import jax
import jax.numpy as jnp
from jax import lax
from jax.experimental import pallas as pl
from jax.experimental.pallas import tpu as pltpu

BN_EPS = 1e-5
LEAKY_SLOPE = 0.01  # nn.LeakyReLU() default


def _round_up(x, m):
    return ((x + m - 1) // m) * m


# ----------------------------------------------------------------------------
# Pallas kernels.
# ----------------------------------------------------------------------------
def _conv_bn_kernel(a_ref, b_ref, sc_ref, sh_ref, o_ref):
    """One row-tile of BN(conv(x)) == (A @ B) * scale + shift (bf16 MXU, f32 accum)."""
    y = jnp.dot(a_ref[...], b_ref[...], preferred_element_type=jnp.float32)
    o_ref[...] = (y * sc_ref[...] + sh_ref[...]).astype(o_ref.dtype)


def _decode_tail_kernel(a_ref, b1_ref, sc1_ref, sh1_ref, s1_ref, co_ref,
                        b2_ref, sc2_ref, sh2_ref, o_ref):
    """Fused decode tail, per row-tile of N*H*W pixels:
         cat = BN1(conv3x3(concat[s1, co0]))      (A = pre-built bf16 im2col)
         fea = co0*cat + s1*cat = (s1 + co0)*cat  (multiply fused into the epilogue)
         out = BN2(conv1x1(fea))                  (1x1 conv commuted with the upsample)
    """
    cat = jnp.dot(a_ref[...], b1_ref[...], preferred_element_type=jnp.float32)
    cat = cat * sc1_ref[...] + sh1_ref[...]
    fea = cat * (s1_ref[...].astype(jnp.float32) + co_ref[...].astype(jnp.float32))
    y = jnp.dot(fea.astype(jnp.bfloat16), b2_ref[...],
                preferred_element_type=jnp.float32)
    o_ref[...] = (y * sc2_ref[...] + sh2_ref[...]).astype(o_ref.dtype)


# ----------------------------------------------------------------------------
# Row-tiled pallas_call wrapper: each operand is either tiled along rows (M) or
# broadcast whole to every tile (weights / BN scale+shift).
# ----------------------------------------------------------------------------
def _row_tiled_call(kernel, operands, row_tiled, M, out_cols, out_dtype):
    tm = 128 if M >= 128 else _round_up(M, 16)      # bf16 sublane tile is (16, 128)
    Mp = _round_up(M, tm)

    ops, in_specs = [], []
    for x, tiled in zip(operands, row_tiled):
        if tiled:
            if Mp != M:
                x = jnp.pad(x, ((0, Mp - M), (0, 0)))
            in_specs.append(pl.BlockSpec((tm, x.shape[1]), lambda i: (i, 0)))
        else:
            in_specs.append(pl.BlockSpec(x.shape, lambda i: (0, 0)))
        ops.append(x)

    out = pl.pallas_call(
        kernel,
        out_shape=jax.ShapeDtypeStruct((Mp, out_cols), out_dtype),
        grid_spec=pltpu.PrefetchScalarGridSpec(
            num_scalar_prefetch=0,
            grid=(Mp // tm,),
            in_specs=in_specs,
            out_specs=pl.BlockSpec((tm, out_cols), lambda i: (i, 0)),
        ),
        compiler_params=pltpu.CompilerParams(
            dimension_semantics=("parallel",),      # megacore / dual-TC sharding over M
            vmem_limit_bytes=32 * 1024 * 1024,      # explicit guard (v7x: 64 MiB VMEM)
        ),
    )(*ops)
    return out if Mp == M else out[:M]


# ----------------------------------------------------------------------------
# Single-pass bf16 im2col (channel concat + K-pad folded into one concatenate).
# ----------------------------------------------------------------------------
def _im2col_bf16(sources, cp, stride, padding, dilation, Ho, Wo):
    kh, kw = cp["kh"], cp["kw"]
    N = sources[0].shape[0]
    assert sum(s.shape[-1] for s in sources) == cp["cin"]
    padded = [jnp.pad(s.astype(jnp.bfloat16),
                      ((0, 0), (padding, padding), (padding, padding), (0, 0)))
              for s in sources]
    cols = []
    for i in range(kh):
        for j in range(kw):
            hs, ws = i * dilation, j * dilation
            for sp in padded:
                cols.append(sp[:, hs:hs + (Ho - 1) * stride + 1:stride,
                                  ws:ws + (Wo - 1) * stride + 1:stride, :])
    if cp["Kp"] > cp["K"]:
        cols.append(jnp.zeros((N, Ho, Wo, cp["Kp"] - cp["K"]), jnp.bfloat16))
    return jnp.concatenate(cols, axis=-1).reshape(N * Ho * Wo, cp["Kp"])


# ----------------------------------------------------------------------------
# Conv param packing (BN folded; weights pre-transposed/padded ONCE, bf16).
# ----------------------------------------------------------------------------
def prepare_conv(w, scale, shift, pad_k=True):
    cout, cin, kh, kw = w.shape
    K = kh * kw * cin
    Kp = _round_up(K, 128) if pad_k else K
    b = jnp.transpose(w, (2, 3, 1, 0)).reshape(K, cout).astype(jnp.bfloat16)
    if Kp != K:
        b = jnp.concatenate([b, jnp.zeros((Kp - K, cout), jnp.bfloat16)], axis=0)
    return {"b": b,
            "scale": scale.reshape(1, cout).astype(jnp.float32),
            "shift": shift.reshape(1, cout).astype(jnp.float32),
            "K": K, "Kp": Kp, "cout": cout, "cin": cin, "kh": kh, "kw": kw}


def conv_bn_nhwc(x, cp, stride=1, padding=1, dilation=1, out_dtype=jnp.bfloat16):
    """BasicConv2d (conv + folded BN) on an NHWC input; output true-cout width."""
    N, H, W, _ = x.shape
    kh, kw = cp["kh"], cp["kw"]
    Ho = (H + 2 * padding - dilation * (kh - 1) - 1) // stride + 1
    Wo = (W + 2 * padding - dilation * (kw - 1) - 1) // stride + 1
    A = _im2col_bf16([x], cp, stride, padding, dilation, Ho, Wo)
    y = _row_tiled_call(_conv_bn_kernel,
                        [A, cp["b"], cp["scale"], cp["shift"]],
                        [True, False, False, False],
                        N * Ho * Wo, cp["cout"], out_dtype)
    return y.reshape(N, Ho, Wo, cp["cout"])


# ----------------------------------------------------------------------------
# Bilinear resize (NHWC): XLA gather + weighted add (memory-bound glue).
# ----------------------------------------------------------------------------
def _interp_1d(out_size, in_size, align_corners):
    i = np.arange(out_size, dtype=np.float64)
    if align_corners:
        src = i * (in_size - 1) / (out_size - 1) if out_size > 1 else np.zeros_like(i)
    else:
        src = (i + 0.5) * (in_size / out_size) - 0.5
        src = np.maximum(src, 0.0)
    src = np.minimum(src, in_size - 1)
    i0 = np.floor(src).astype(np.int32)
    i1 = np.minimum(i0 + 1, in_size - 1)
    w = (src - i0).astype(np.float32)
    return jnp.asarray(i0), jnp.asarray(i1), jnp.asarray(w)


def bilinear_resize_nhwc(x, out_h, out_w, align_corners):
    _, H, W, _ = x.shape
    i0, i1, wh = _interp_1d(out_h, H, align_corners)
    j0, j1, ww = _interp_1d(out_w, W, align_corners)
    wh = wh[None, :, None, None]
    ww = ww[None, None, :, None]
    xr = jnp.take(x, i0, axis=1) * (1.0 - wh) + jnp.take(x, i1, axis=1) * wh
    return jnp.take(xr, j0, axis=2) * (1.0 - ww) + jnp.take(xr, j1, axis=2) * ww


# ----------------------------------------------------------------------------
# Parameters (deterministic synthetic init; BN folded to eval-mode scale/shift).
# ----------------------------------------------------------------------------
class ParamGen:
    def __init__(self, seed=0):
        self.key = jax.random.PRNGKey(seed)

    def _next(self):
        self.key, sub = jax.random.split(self.key)
        return sub

    def conv_w(self, cout, cin, kh, kw):
        fan_in = cin * kh * kw
        return jax.random.normal(self._next(), (cout, cin, kh, kw),
                                 jnp.float32) / np.sqrt(fan_in)


def make_basic_conv(pg, cin, cout, k, pad_k):
    w = pg.conv_w(cout, cin, k, k)
    gamma = jnp.ones((cout,), jnp.float32)
    beta = jnp.zeros((cout,), jnp.float32)
    rmean = jnp.zeros((cout,), jnp.float32)
    rvar = jnp.ones((cout,), jnp.float32)
    scale = gamma / jnp.sqrt(rvar + BN_EPS)
    shift = beta - rmean * scale
    return prepare_conv(w, scale, shift, pad_k=pad_k), {"w": w, "scale": scale, "shift": shift}


def build_decode_params(c1, c2, seed=0):
    pg = ParamGen(seed)
    m_p, m_r = make_basic_conv(pg, c1 * 2, c1, 3, pad_k=True)
    co_p, co_r = make_basic_conv(pg, c2, c1, 3, pad_k=True)
    out_p, out_r = make_basic_conv(pg, c1, c1, 1, pad_k=False)
    return ({"m": m_p, "co": co_p, "out": out_p},
            {"m": m_r, "co": co_r, "out": out_r})


# ----------------------------------------------------------------------------
# decode.forward  (s1, co0 are NCHW at the module boundary, like PyTorch)
# ----------------------------------------------------------------------------
def decode_forward(params, s1, co0):
    N, c1, H, W = s1.shape
    s1_l = jnp.transpose(s1, (0, 2, 3, 1)).astype(jnp.bfloat16)   # NHWC, bf16 once
    co0_l = jnp.transpose(co0, (0, 2, 3, 1))

    # Preserve the original (quirky) check: both H and W compared to co0.shape[2].
    if H != co0.shape[2] or W != co0.shape[2]:
        co0_l = bilinear_resize_nhwc(co0_l, H, W, align_corners=False)
        co0_l = conv_bn_nhwc(co0_l, params["co"], padding=1)      # bf16 (N,H,W,c1)
    else:
        co0_l = co0_l.astype(jnp.bfloat16)

    # Fused tail: cat = m(concat[s1, co0]); fea = co0*cat + s1*cat; out = out_conv(fea)
    # -- all in one Pallas kernel at HxW; the 1x1 conv+BN is commuted with the upsample.
    M = N * H * W
    A = _im2col_bf16([s1_l, co0_l], params["m"], 1, 1, 1, H, W)
    pm, po = params["m"], params["out"]
    out_small = _row_tiled_call(
        _decode_tail_kernel,
        [A, pm["b"], pm["scale"], pm["shift"],
         s1_l.reshape(M, c1), co0_l.reshape(M, c1),
         po["b"], po["scale"], po["shift"]],
        [True, False, False, False, True, True, False, False, False],
        M, po["cout"], jnp.float32,
    ).reshape(N, H, W, po["cout"])

    # 2x upsample (align_corners=True) then LeakyReLU: equivalent to the reference
    # leaky(out(upsample(fea))) because the 1x1 conv+BN is per-pixel affine and the
    # bilinear weights sum to 1.
    out = bilinear_resize_nhwc(out_small, 2 * H, 2 * W, align_corners=True)
    out = jnp.where(out >= 0, out, LEAKY_SLOPE * out)
    return jnp.transpose(out, (0, 3, 1, 2))                       # NCHW at the boundary


# ----------------------------------------------------------------------------
# Pure-JAX reference (mirrors the PyTorch op order exactly; bf16 conv inputs).
# ----------------------------------------------------------------------------
def decode_reference(rawp, s1, co0):
    def bconv(x, p, padding=0):                    # x: NHWC
        w = jnp.transpose(p["w"], (2, 3, 1, 0)).astype(jnp.bfloat16)   # HWIO
        y = lax.conv_general_dilated(x.astype(jnp.bfloat16), w, (1, 1),
                                     [(padding, padding)] * 2,
                                     dimension_numbers=("NHWC", "HWIO", "NHWC"),
                                     preferred_element_type=jnp.float32)
        return y * p["scale"] + p["shift"]

    N, c1, H, W = s1.shape
    s1_l = jnp.transpose(s1, (0, 2, 3, 1))
    co0_l = jnp.transpose(co0, (0, 2, 3, 1))
    if H != co0.shape[2] or W != co0.shape[2]:
        co0_l = bilinear_resize_nhwc(co0_l, H, W, align_corners=False)
        co0_l = bconv(co0_l, rawp["co"], padding=1)
    cat = bconv(jnp.concatenate([s1_l, co0_l], axis=-1), rawp["m"], padding=1)
    fea = co0_l * cat + s1_l * cat
    fea = bilinear_resize_nhwc(fea, 2 * H, 2 * W, align_corners=True)
    out = bconv(fea, rawp["out"])
    out = jnp.where(out >= 0, out, LEAKY_SLOPE * out)
    return jnp.transpose(out, (0, 3, 1, 2))


# ----------------------------------------------------------------------------
if __name__ == "__main__":
    c1, c2 = 32, 64
    N, H, W = 2, 16, 16

    key = jax.random.PRNGKey(0)
    k1, k2 = jax.random.split(key)
    s1 = jax.random.normal(k1, (N, c1, H, W), jnp.float32)
    co0 = jax.random.normal(k2, (N, c2, H // 2, W // 2), jnp.float32)

    params, raw_params = build_decode_params(c1, c2, seed=0)   # packed once (bf16, padded)
    fwd = jax.jit(lambda a, b: decode_forward(params, a, b))
    out = jax.block_until_ready(fwd(s1, co0))

    assert out.shape == (N, c1, 2 * H, 2 * W)
    assert bool(jnp.all(jnp.isfinite(out)))

    ref = jax.block_until_ready(
        jax.jit(lambda a, b: decode_reference(raw_params, a, b))(s1, co0))
    assert bool(jnp.all(jnp.abs(out - ref) <= 0.1 + 0.05 * jnp.abs(ref)))

    print("KERNEL_OK")
</pallas_src>

<mosaic_0001>
module attributes {stable_mosaic.version = 11 : i64} {
  func.func @_conv_bn_kernel(%arg0: i32, %arg1: memref<128x640xbf16, #tpu.memory_space<vmem>>, %arg2: memref<640x32xbf16, #tpu.memory_space<vmem>>, %arg3: memref<1x32xf32, #tpu.memory_space<vmem>>, %arg4: memref<1x32xf32, #tpu.memory_space<vmem>>, %arg5: memref<128x32xbf16, #tpu.memory_space<vmem>>) attributes {dimension_semantics = [#tpu.dimension_semantics<parallel>], iteration_bounds = array<i64: 4>, scalar_prefetch = 0 : i64, scratch_operands = 0 : i64, tpu.core_type = #tpu.core_type<tc>, window_params = [{transform_indices = @transform_0, window_bounds = array<i64: 128, 640>}, {pipeline_mode = #tpu.pipeline_mode<synchronous>, transform_indices = @transform_1, window_bounds = array<i64: 640, 32>}, {pipeline_mode = #tpu.pipeline_mode<synchronous>, transform_indices = @transform_2, window_bounds = array<i64: 1, 32>}, {pipeline_mode = #tpu.pipeline_mode<synchronous>, transform_indices = @transform_3, window_bounds = array<i64: 1, 32>}, {transform_indices = @transform_4, window_bounds = array<i64: 128, 32>}]} {
    %c0 = arith.constant 0 : index
    %c0_0 = arith.constant 0 : index
    %0 = vector.load %arg1[%c0, %c0_0] : memref<128x640xbf16, #tpu.memory_space<vmem>>, vector<128x640xbf16>
    %c0_1 = arith.constant 0 : index
    %c0_2 = arith.constant 0 : index
    %1 = vector.load %arg2[%c0_1, %c0_2] : memref<640x32xbf16, #tpu.memory_space<vmem>>, vector<640x32xbf16>
    %cst = arith.constant dense<0.000000e+00> : vector<128x32xf32>
    %2 = tpu.matmul %0, %1, %cst {dimension_numbers = #tpu.dot_dimension_numbers<[1], [0], [0], [1], [0, 0, 1, 1], [], []>} : vector<128x640xbf16>, vector<640x32xbf16>, vector<128x32xf32> -> vector<128x32xf32>
    %c0_3 = arith.constant 0 : index
    %c0_4 = arith.constant 0 : index
    %3 = vector.load %arg3[%c0_3, %c0_4] : memref<1x32xf32, #tpu.memory_space<vmem>>, vector<1x32xf32>
    %4 = vector.broadcast %3 : vector<1x32xf32> to vector<128x32xf32>
    %5 = arith.mulf %2, %4 : vector<128x32xf32>
    %c0_5 = arith.constant 0 : index
    %c0_6 = arith.constant 0 : index
    %6 = vector.load %arg4[%c0_5, %c0_6] : memref<1x32xf32, #tpu.memory_space<vmem>>, vector<1x32xf32>
    %7 = vector.broadcast %6 : vector<1x32xf32> to vector<128x32xf32>
    %8 = arith.addf %5, %7 : vector<128x32xf32>
    %9 = arith.truncf %8 : vector<128x32xf32> to vector<128x32xbf16>
    %c0_7 = arith.constant 0 : index
    %c0_8 = arith.constant 0 : index
    %10 = vector.load %arg5[%c0_7, %c0_8] : memref<128x32xbf16, #tpu.memory_space<vmem>>, vector<128x32xbf16>
    tpu.vector_store %arg5[%c0_7, %c0_8], %9 {strides = array<i32>} : memref<128x32xbf16, #tpu.memory_space<vmem>>, vector<128x32xbf16>,
    return
  }
  func.func @transform_0(%arg0: i32) -> (i32, i32) {
    %c0_i32 = arith.constant 0 : i32
    %c0_i32_0 = arith.constant 0 : i32
    return %arg0, %c0_i32 : i32, i32
  }
  func.func @transform_1(%arg0: i32) -> (i32, i32) {
    %c0_i32 = arith.constant 0 : i32
    %c0_i32_0 = arith.constant 0 : i32
    %c0_i32_1 = arith.constant 0 : i32
    return %c0_i32, %c0_i32_0 : i32, i32
  }
  func.func @transform_2(%arg0: i32) -> (i32, i32) {
    %c0_i32 = arith.constant 0 : i32
    %c0_i32_0 = arith.constant 0 : i32
    %c0_i32_1 = arith.constant 0 : i32
    return %c0_i32, %c0_i32_0 : i32, i32
  }
  func.func @transform_3(%arg0: i32) -> (i32, i32) {
    %c0_i32 = arith.constant 0 : i32
    %c0_i32_0 = arith.constant 0 : i32
    %c0_i32_1 = arith.constant 0 : i32
    return %c0_i32, %c0_i32_0 : i32, i32
  }
  func.func @transform_4(%arg0: i32) -> (i32, i32) {
    %c0_i32 = arith.constant 0 : i32
    %c0_i32_0 = arith.constant 0 : i32
    return %arg0, %c0_i32 : i32, i32
  }
}

module attributes {stable_mosaic.version = 11 : i64} {
  func.func @_decode_tail_kernel(%arg0: i32, %arg1: memref<128x640xbf16, #tpu.memory_space<vmem>>, %arg2: memref<640x32xbf16, #tpu.memory_space<vmem>>, %arg3: memref<1x32xf32, #tpu.memory_space<vmem>>, %arg4: memref<1x32xf32, #tpu.memory_space<vmem>>, %arg5: memref<128x32xbf16, #tpu.memory_space<vmem>>, %arg6: memref<128x32xbf16, #tpu.memory_space<vmem>>, %arg7: memref<32x32xbf16, #tpu.memory_space<vmem>>, %arg8: memref<1x32xf32, #tpu.memory_space<vmem>>, %arg9: memref<1x32xf32, #tpu.memory_space<vmem>>, %arg10: memref<128x32xf32, #tpu.memory_space<vmem>>) attributes {dimension_semantics = [#tpu.dimension_semantics<parallel>], iteration_bounds = array<i64: 4>, scalar_prefetch = 0 : i64, scratch_operands = 0 : i64, tpu.core_type = #tpu.core_type<tc>, window_params = [{transform_indices = @transform_0, window_bounds = array<i64: 128, 640>}, {pipeline_mode = #tpu.pipeline_mode<synchronous>, transform_indices = @transform_1, window_bounds = array<i64: 640, 32>}, {pipeline_mode = #tpu.pipeline_mode<synchronous>, transform_indices = @transform_2, window_bounds = array<i64: 1, 32>}, {pipeline_mode = #tpu.pipeline_mode<synchronous>, transform_indices = @transform_3, window_bounds = array<i64: 1, 32>}, {transform_indices = @transform_4, window_bounds = array<i64: 128, 32>}, {transform_indices = @transform_5, window_bounds = array<i64: 128, 32>}, {pipeline_mode = #tpu.pipeline_mode<synchronous>, transform_indices = @transform_6, window_bounds = array<i64: 32, 32>}, {pipeline_mode = #tpu.pipeline_mode<synchronous>, transform_indices = @transform_7, window_bounds = array<i64: 1, 32>}, {pipeline_mode = #tpu.pipeline_mode<synchronous>, transform_indices = @transform_8, window_bounds = array<i64: 1, 32>}, {transform_indices = @transform_9, window_bounds = array<i64: 128, 32>}]} {
    %c0 = arith.constant 0 : index
    %c0_0 = arith.constant 0 : index
    %0 = vector.load %arg1[%c0, %c0_0] : memref<128x640xbf16, #tpu.memory_space<vmem>>, vector<128x640xbf16>
    %c0_1 = arith.constant 0 : index
    %c0_2 = arith.constant 0 : index
    %1 = vector.load %arg2[%c0_1, %c0_2] : memref<640x32xbf16, #tpu.memory_space<vmem>>, vector<640x32xbf16>
    %cst = arith.constant dense<0.000000e+00> : vector<128x32xf32>
    %2 = tpu.matmul %0, %1, %cst {dimension_numbers = #tpu.dot_dimension_numbers<[1], [0], [0], [1], [0, 0, 1, 1], [], []>} : vector<128x640xbf16>, vector<640x32xbf16>, vector<128x32xf32> -> vector<128x32xf32>
    %c0_3 = arith.constant 0 : index
    %c0_4 = arith.constant 0 : index
    %3 = vector.load %arg3[%c0_3, %c0_4] : memref<1x32xf32, #tpu.memory_space<vmem>>, vector<1x32xf32>
    %4 = vector.broadcast %3 : vector<1x32xf32> to vector<128x32xf32>
    %5 = arith.mulf %2, %4 : vector<128x32xf32>
    %c0_5 = arith.constant 0 : index
    %c0_6 = arith.constant 0 : index
    %6 = vector.load %arg4[%c0_5, %c0_6] : memref<1x32xf32, #tpu.memory_space<vmem>>, vector<1x32xf32>
    %7 = vector.broadcast %6 : vector<1x32xf32> to vector<128x32xf32>
    %8 = arith.addf %5, %7 : vector<128x32xf32>
    %c0_7 = arith.constant 0 : index
    %c0_8 = arith.constant 0 : index
    %9 = vector.load %arg5[%c0_7, %c0_8] : memref<128x32xbf16, #tpu.memory_space<vmem>>, vector<128x32xbf16>
    %10 = arith.extf %9 : vector<128x32xbf16> to vector<128x32xf32>
    %c0_9 = arith.constant 0 : index
    %c0_10 = arith.constant 0 : index
    %11 = vector.load %arg6[%c0_9, %c0_10] : memref<128x32xbf16, #tpu.memory_space<vmem>>, vector<128x32xbf16>
    %12 = arith.extf %11 : vector<128x32xbf16> to vector<128x32xf32>
    %13 = arith.addf %10, %12 : vector<128x32xf32>
    %14 = arith.mulf %8, %13 : vector<128x32xf32>
    %15 = arith.truncf %14 : vector<128x32xf32> to vector<128x32xbf16>
    %c0_11 = arith.constant 0 : index
    %c0_12 = arith.constant 0 : index
    %16 = vector.load %arg7[%c0_11, %c0_12] : memref<32x32xbf16, #tpu.memory_space<vmem>>, vector<32x32xbf16>
    %cst_13 = arith.constant dense<0.000000e+00> : vector<128x32xf32>
    %17 = tpu.matmul %15, %16, %cst_13 {dimension_numbers = #tpu.dot_dimension_numbers<[1], [0], [0], [1], [0, 0, 1, 1], [], []>} : vector<128x32xbf16>, vector<32x32xbf16>, vector<128x32xf32> -> vector<128x32xf32>
    %c0_14 = arith.constant 0 : index
    %c0_15 = arith.constant 0 : index
    %18 = vector.load %arg8[%c0_14, %c0_15] : memref<1x32xf32, #tpu.memory_space<vmem>>, vector<1x32xf32>
    %19 = vector.broadcast %18 : vector<1x32xf32> to vector<128x32xf32>
    %20 = arith.mulf %17, %19 : vector<128x32xf32>
    %c0_16 = arith.constant 0 : index
    %c0_17 = arith.constant 0 : index
    %21 = vector.load %arg9[%c0_16, %c0_17] : memref<1x32xf32, #tpu.memory_space<vmem>>, vector<1x32xf32>
    %22 = vector.broadcast %21 : vector<1x32xf32> to vector<128x32xf32>
    %23 = arith.addf %20, %22 : vector<128x32xf32>
    %c0_18 = arith.constant 0 : index
    %c0_19 = arith.constant 0 : index
    %24 = vector.load %arg10[%c0_18, %c0_19] : memref<128x32xf32, #tpu.memory_space<vmem>>, vector<128x32xf32>
    tpu.vector_store %arg10[%c0_18, %c0_19], %23 {strides = array<i32>} : memref<128x32xf32, #tpu.memory_space<vmem>>, vector<128x32xf32>,
    return
  }
  func.func @transform_0(%arg0: i32) -> (i32, i32) {
    %c0_i32 = arith.constant 0 : i32
    %c0_i32_0 = arith.constant 0 : i32
    return %arg0, %c0_i32 : i32, i32
  }
  func.func @transform_1(%arg0: i32) -> (i32, i32) {
    %c0_i32 = arith.constant 0 : i32
    %c0_i32_0 = arith.constant 0 : i32
    %c0_i32_1 = arith.constant 0 : i32
    return %c0_i32, %c0_i32_0 : i32, i32
  }
  func.func @transform_2(%arg0: i32) -> (i32, i32) {
    %c0_i32 = arith.constant 0 : i32
    %c0_i32_0 = arith.constant 0 : i32
    %c0_i32_1 = arith.constant 0 : i32
    return %c0_i32, %c0_i32_0 : i32, i32
  }
  func.func @transform_3(%arg0: i32) -> (i32, i32) {
    %c0_i32 = arith.constant 0 : i32
    %c0_i32_0 = arith.constant 0 : i32
    %c0_i32_1 = arith.constant 0 : i32
    return %c0_i32, %c0_i32_0 : i32, i32
  }
  func.func @transform_4(%arg0: i32) -> (i32, i32) {
    %c0_i32 = arith.constant 0 : i32
    %c0_i32_0 = arith.constant 0 : i32
    return %arg0, %c0_i32 : i32, i32
  }
  func.func @transform_5(%arg0: i32) -> (i32, i32) {
    %c0_i32 = arith.constant 0 : i32
    %c0_i32_0 = arith.constant 0 : i32
    return %arg0, %c0_i32 : i32, i32
  }
  func.func @transform_6(%arg0: i32) -> (i32, i32) {
    %c0_i32 = arith.constant 0 : i32
    %c0_i32_0 = arith.constant 0 : i32
    %c0_i32_1 = arith.constant 0 : i32
    return %c0_i32, %c0_i32_0 : i32, i32
  }
  func.func @transform_7(%arg0: i32) -> (i32, i32) {
    %c0_i32 = arith.constant 0 : i32
    %c0_i32_0 = arith.constant 0 : i32
    %c0_i32_1 = arith.constant 0 : i32
    return %c0_i32, %c0_i32_0 : i32, i32
  }
  func.func @transform_8(%arg0: i32) -> (i32, i32) {
    %c0_i32 = arith.constant 0 : i32
    %c0_i32_0 = arith.constant 0 : i32
    %c0_i32_1 = arith.constant 0 : i32
    return %c0_i32, %c0_i32_0 : i32, i32
  }
  func.func @transform_9(%arg0: i32) -> (i32, i32) {
    %c0_i32 = arith.constant 0 : i32
    %c0_i32_0 = arith.constant 0 : i32
    return %arg0, %c0_i32 : i32, i32
  }
}

</mosaic_0001>

<llo_original>
// kernel: _lambda_.2
$region0: #{_lambda_.2}
  #allocation0 [shape = 'u32[]', space=smem, size = 0x4, offset = 0x4, fixed_abs, tag = 'smem constant byte address 0x4 - core index']
  #allocation1 [shape = 'u32[144,128]{1,0:T(1,128)}', space=vmem, size = 0x12000, scoped, tag = 'internal scratch']
  %s0 = inlined_call_operand.vmem [shape: bf16[512,640], index: 0, kind: input, shape index: {}]
  %s1 = inlined_call_operand.vmem [shape: bf16[640,32], index: 1, kind: input, shape index: {}]
  %s2 = inlined_call_operand.vmem [shape: f32[1,32], index: 2, kind: input, shape index: {}]
  %s3 = inlined_call_operand.vmem [shape: f32[1,32], index: 3, kind: input, shape index: {}]
  %s4 = inlined_call_operand.vmem [shape: bf16[512,32], index: 4, kind: output, shape index: {}]
  %s5 = sld [smem:[#allocation0]]
  $region49: #{_lambda_.2} parent=0
    _
  %s7 = ssub.s32 1, %s5
  %s8 = scalar_select 0, %s7, %s5
  loop: start=0, step=1, limit=6
  $region2: #{_lambda_.2} parent=0 // loop_pre_header
    _
  $region3: #{_lambda_.2} parent=0 // loop_header
    %s10 = sphi 0, %s14
    %p11 = scmp.ge.s32.totalorder %s10, 6
    %s20 = sphi 0, %s22
    %s23 = sphi 0, %s20
    %s24 = sphi 0, %s23
    %s40 = sphi 0, %s24
    %s44 = sphi 0, %s44
    %s46 = sphi 0, %s44
    %s47 = sphi 0, %s46
    %s61 = sphi 0, %s47
    %s65 = sphi 0, %s65
    %s67 = sphi 0, %s65
    %s68 = sphi 0, %s67
    %s82 = sphi 0, %s68
    %s86 = sphi 0, %s86
    %s88 = sphi 0, %s86
    %s89 = sphi 0, %s88
    %s103 = sphi 0, %s89
    %s109 = sphi 0, %s111
    %s112 = sphi 0, %s109
    %s113 = sphi 0, %s112
    %s129 = sphi 0, %s113
  $region4: #{_lambda_.2} parent=0 // loop_header_branch
    %13 = sbr.rel (%p11) target = $region8
  $region5: #{_lambda_.2} parent=0 // loop_body
    %s15 = ssub.s32 %s10, 1
    %s16 = ssub.s32 %s10, 2
    %s17 = sadd.s32 %s10, 1
    %s18 = ssub.s32 %s10, %s17
    %p19 = scmp.eq.s32.totalorder %s18, 0
    %s21 = sadd.s32 %s20, 1
    %s22 = scalar_select %p19, %s20, %s21
    %p25 = pneg %p19
    %p26 = scmp.eq.s32.totalorder %s10, 3
    %p27 = por %p25, %p26
    %p28 = scmp.ne.s32.totalorder %s20, %s23
    %p29 = scmp.eq.s32.totalorder %s10, 0
    %p30 = por %p28, %p29
    %p31 = scmp.ne.s32.totalorder %s20, %s23
    %p32 = scmp.eq.s32.totalorder %s15, 3
    %p33 = por %p31, %p32
    %p34 = scmp.ne.s32.totalorder %s23, %s24
    %p35 = scmp.eq.s32.totalorder %s15, 0
    %p36 = por %p34, %p35
    %p37 = scmp.ne.s32.totalorder %s23, %s24
    %p38 = scmp.eq.s32.totalorder %s16, 3
    %p39 = por %p37, %p38
    %p41 = scmp.ne.s32.totalorder %s24, %s40
    %p42 = scmp.eq.s32.totalorder %s16, 0
    %p43 = por %p41, %p42
    %s45 = sadd.s32 %s44, 1
    %p48 = scmp.eq.s32.totalorder %s10, 3
    %p49 = scmp.ne.s32.totalorder %s44, %s46
    %p50 = scmp.eq.s32.totalorder %s10, 0
    %p51 = por %p49, %p50
    %p52 = scmp.ne.s32.totalorder %s44, %s46
    %p53 = scmp.eq.s32.totalorder %s15, 3
    %p54 = por %p52, %p53
    %p55 = scmp.ne.s32.totalorder %s46, %s47
    %p56 = scmp.eq.s32.totalorder %s15, 0
    %p57 = por %p55, %p56
    %p58 = scmp.ne.s32.totalorder %s46, %s47
    %p59 = scmp.eq.s32.totalorder %s16, 3
    %p60 = por %p58, %p59
    %p62 = scmp.ne.s32.totalorder %s47, %s61
    %p63 = scmp.eq.s32.totalorder %s16, 0
    %p64 = por %p62, %p63
    %s66 = sadd.s32 %s65, 1
    %p69 = scmp.eq.s32.totalorder %s10, 3
    %p70 = scmp.ne.s32.totalorder %s65, %s67
    %p71 = scmp.eq.s32.totalorder %s10, 0
    %p72 = por %p70, %p71
    %p73 = scmp.ne.s32.totalorder %s65, %s67
    %p74 = scmp.eq.s32.totalorder %s15, 3
    %p75 = por %p73, %p74
    %p76 = scmp.ne.s32.totalorder %s67, %s68
    %p77 = scmp.eq.s32.totalorder %s15, 0
    %p78 = por %p76, %p77
    %p79 = scmp.ne.s32.totalorder %s67, %s68
    %p80 = scmp.eq.s32.totalorder %s16, 3
    %p81 = por %p79, %p80
    %p83 = scmp.ne.s32.totalorder %s68, %s82
    %p84 = scmp.eq.s32.totalorder %s16, 0
    %p85 = por %p83, %p84
    %s87 = sadd.s32 %s86, 1
    %p90 = scmp.eq.s32.totalorder %s10, 3
    %p91 = scmp.ne.s32.totalorder %s86, %s88
    %p92 = scmp.eq.s32.totalorder %s10, 0
    %p93 = por %p91, %p92
    %p94 = scmp.ne.s32.totalorder %s86, %s88
    %p95 = scmp.eq.s32.totalorder %s15, 3
    %p96 = por %p94, %p95
    %p97 = scmp.ne.s32.totalorder %s88, %s89
    %p98 = scmp.eq.s32.totalorder %s15, 0
    %p99 = por %p97, %p98
    %p100 = scmp.ne.s32.totalorder %s88, %s89
    %p101 = scmp.eq.s32.totalorder %s16, 3
    %p102 = por %p100, %p101
    %p104 = scmp.ne.s32.totalorder %s89, %s103
    %p105 = scmp.eq.s32.totalorder %s16, 0
    %p106 = por %p104, %p105
    %s107 = ssub.s32 %s10, %s17
    %p108 = scmp.eq.s32.totalorder %s107, 0
    %s110 = sadd.s32 %s109, 1
    %s111 = scalar_select %p108, %s109, %s110
    %p114 = pneg %p108
    %p115 = scmp.eq.s32.totalorder %s10, 3
    %p116 = por %p114, %p115
    %p117 = scmp.ne.s32.totalorder %s109, %s112
    %p118 = scmp.eq.s32.totalorder %s10, 0
    %p119 = por %p117, %p118
    %p120 = scmp.ne.s32.totalorder %s109, %s112
    %p121 = scmp.eq.s32.totalorder %s15, 3
    %p122 = por %p120, %p121
    %p123 = scmp.ne.s32.totalorder %s112, %s113
    %p124 = scmp.eq.s32.totalorder %s15, 0
    %p125 = por %p123, %p124
    %p126 = scmp.ne.s32.totalorder %s112, %s113
    %p127 = scmp.eq.s32.totalorder %s16, 3
    %p128 = por %p126, %p127
    %p130 = scmp.ne.s32.totalorder %s113, %s129
    %p131 = scmp.eq.s32.totalorder %s16, 0
    %p132 = por %p130, %p131
    %p133 = scmp.le.s32.totalorder 1, %s10
    %p134 = scmp.lt.s32.totalorder %s10, 5
    %p135 = pnand %p133, %p134
    %p136 = pneg %p135
    // Predicated region
    $region9: #{_lambda_.2} parent=5 // pred_check
      _
    $region10: #{_lambda_.2} parent=5 // pred_check_branch
      %138 = sbr.rel (%p135) target = $region12
    $region11: #{_lambda_.2} parent=5 // pred_region
      %s139 = ssub.s32 %s10, 1
      // Predicated region
      $region13: #{_lambda_.2} parent=11 // pred_check
        %p140 = pneg %p57
      $region14: #{_lambda_.2} parent=11 // pred_check_branch
        %142 = sbr.rel (%p140) target = $region16
      $region15: #{_lambda_.2} parent=11 // pred_region
        _
      $region16: #{_lambda_.2} parent=11 // pred_fallthru
        _
      // Predicated region
      $region17: #{_lambda_.2} parent=11 // pred_check
        %p143 = pneg %p78
      $region18: #{_lambda_.2} parent=11 // pred_check_branch
        %145 = sbr.rel (%p143) target = $region20
      $region19: #{_lambda_.2} parent=11 // pred_region
        _
      $region20: #{_lambda_.2} parent=11 // pred_fallthru
        _
      // Predicated region
      $region21: #{_lambda_.2} parent=11 // pred_check
        %p146 = pneg %p99
      $region22: #{_lambda_.2} parent=11 // pred_check_branch
        %148 = sbr.rel (%p146) target = $region24
      $region23: #{_lambda_.2} parent=11 // pred_region
        _
      $region24: #{_lambda_.2} parent=11 // pred_fallthru
        _
    $region12: #{_lambda_.2} parent=5 // pred_fallthru
      _
    %p149 = scmp.lt.s32.totalorder %s10, 4
    // Predicated region
    $region25: #{_lambda_.2} parent=5 // pred_check
      %p150 = pneg %p149
    $region26: #{_lambda_.2} parent=5 // pred_check_branch
      %152 = sbr.rel (%p150) target = $region28
    $region27: #{_lambda_.2} parent=5 // pred_region
      // Predicated region
      $region29: #{_lambda_.2} parent=27 // pred_check
        %p153 = pneg %p30
      $region30: #{_lambda_.2} parent=27 // pred_check_branch
        %155 = sbr.rel (%p153) target = $region32
      $region31: #{_lambda_.2} parent=27 // pred_region
        %s156 = smul.u32 16, %s10
        %p157 = scmp.lt.s32.totalorder %s156, 63
        %s158 = scalar_select %p157, %s156, 63
        %s159 = smul.addr %s158, 5
        %s160 = smul.addr %s159, 4
        %s161 = scalar_lea.vmem %s0, %s160
        %s162 = smul.u32 16, %s10
      $region32: #{_lambda_.2} parent=27 // pred_fallthru
        _
    $region28: #{_lambda_.2} parent=5 // pred_fallthru
      _
    %p163 = scmp.le.s32.totalorder 1, %s10
    %p164 = scmp.lt.s32.totalorder %s10, 5
    %p165 = pnand %p163, %p164
    %p166 = pneg %p165
    // Predicated region
    $region33: #{_lambda_.2} parent=5 // pred_check
      _
    $region34: #{_lambda_.2} parent=5 // pred_check_branch
      %168 = sbr.rel (%p165) target = $region36
    $region35: #{_lambda_.2} parent=5 // pred_region
      %s169 = ssub.s32 %s10, 1
      %s170 = smul.u32 16, %s15
      %p171 = scmp.lt.s32.totalorder %s170, 63
      %s172 = scalar_select %p171, %s170, 63
      %s173 = smul.addr %s172, 5
      %s174 = smul.addr %s173, 4
      %s175 = scalar_lea.vmem %s0, %s174
      %p176 = pneg %p36
      %p177 = pneg %p33
      %p178 = pneg %p57
      %p179 = pneg %p54
      %p180 = pneg %p78
      %p181 = pneg %p75
      %p182 = pneg %p99
      %p183 = pneg %p96
      %p184 = pneg %p125
      %p185 = pneg %p122
      %s186 = smul.u32 16, %s15
      %p187 = scmp.lt.s32.totalorder %s186, 63
      %s188 = scalar_select %p187, %s186, 63
      %s189 = smul.addr %s188, 4
      %s190 = scalar_lea.vmem %s4, %s189
      %s191 = smul.u32 16, %s15
      %p192 = scmp.lt.s32.totalorder %s191, 63
      %s193 = scalar_select %p192, %s191, 63
      %s194 = smul.addr %s193, 5
      %s195 = smul.addr %s194, 4
      %s196 = scalar_lea.vmem %s0, %s195
      %s197 = smul.u32 16, %s15
      %s198 = smul.u32 16, %s15
      %p199 = scmp.lt.s32.totalorder %s198, 63
      %s200 = scalar_select %p199, %s198, 63
      %s201 = smul.addr %s200, 4
      %s202 = scalar_lea.vmem %s4, %s201
      %s203 = smul.u32 16, %s15
      %v205 = vld [vmem:[%s196] sm:$0xff]
      %v206 = vld [vmem:[%s196 + $0x8] sm:$0xff]
      %v207 = vld [vmem:[%s196 + $0x10] sm:$0xf]
      %v208 = vld [vmem:[%s196 + $0x14] sm:$0xff]
      %v209 = vld [vmem:[%s196 + $0x1c] sm:$0xff]
      %v210 = vld [vmem:[%s196 + $0x24] sm:$0xf]
      %v211 = vld [vmem:[%s196 + $0x28] sm:$0xff]
      %v212 = vld [vmem:[%s196 + $0x30] sm:$0xff]
      %v213 = vld [vmem:[%s196 + $0x38] sm:$0xf]
      %v214 = vld [vmem:[%s196 + $0x3c] sm:$0xff]
      %v215 = vld [vmem:[%s196 + $0x44] sm:$0xff]
      %v216 = vld [vmem:[%s196 + $0x4c] sm:$0xf]
      %v217 = vld [vmem:[%s196 + $0x50] sm:$0xff]
      %v218 = vld [vmem:[%s196 + $0x58] sm:$0xff]
      %v219 = vld [vmem:[%s196 + $0x60] sm:$0xf]
      %v220 = vld [vmem:[%s196 + $0x64] sm:$0xff]
      %v221 = vld [vmem:[%s196 + $0x6c] sm:$0xff]
      %v222 = vld [vmem:[%s196 + $0x74] sm:$0xf]
      %v223 = vld [vmem:[%s196 + $0x78] sm:$0xff]
      %v224 = vld [vmem:[%s196 + $0x80] sm:$0xff]
      %v225 = vld [vmem:[%s196 + $0x88] sm:$0xf]
      %v226 = vld [vmem:[%s196 + $0x8c] sm:$0xff]
      %v227 = vld [vmem:[%s196 + $0x94] sm:$0xff]
      %v228 = vld [vmem:[%s196 + $0x9c] sm:$0xf]
      %v229 = vld [vmem:[%s196 + $0xa0] sm:$0xff]
      %v230 = vld [vmem:[%s196 + $0xa8] sm:$0xff]
      %v231 = vld [vmem:[%s196 + $0xb0] sm:$0xf]
      %v232 = vld [vmem:[%s196 + $0xb4] sm:$0xff]
      %v233 = vld [vmem:[%s196 + $0xbc] sm:$0xff]
      %v234 = vld [vmem:[%s196 + $0xc4] sm:$0xf]
      %v235 = vld [vmem:[%s196 + $0xc8] sm:$0xff]
      %v236 = vld [vmem:[%s196 + $0xd0] sm:$0xff]
      %v237 = vld [vmem:[%s196 + $0xd8] sm:$0xf]
      %v238 = vld [vmem:[%s196 + $0xdc] sm:$0xff]
      %v239 = vld [vmem:[%s196 + $0xe4] sm:$0xff]
      %v240 = vld [vmem:[%s196 + $0xec] sm:$0xf]
      %v241 = vld [vmem:[%s196 + $0xf0] sm:$0xff]
      %v242 = vld [vmem:[%s196 + $0xf8] sm:$0xff]
      %v243 = vld [vmem:[%s196 + $0x100] sm:$0xf]
      %v244 = vld [vmem:[%s196 + $0x104] sm:$0xff]
      %v245 = vld [vmem:[%s196 + $0x10c] sm:$0xff]
      %v246 = vld [vmem:[%s196 + $0x114] sm:$0xf]
      %v247 = vld [vmem:[%s196 + $0x118] sm:$0xff]
      %v248 = vld [vmem:[%s196 + $0x120] sm:$0xff]
      %v249 = vld [vmem:[%s196 + $0x128] sm:$0xf]
      %v250 = vld [vmem:[%s196 + $0x12c] sm:$0xff]
      %v251 = vld [vmem:[%s196 + $0x134] sm:$0xff]
      %v252 = vld [vmem:[%s196 + $0x13c] sm:$0xf]
      %v253 = vld [vmem:[%s1] sm:$0xf]
      %v254 = vld [vmem:[%s1 + $0x4] sm:$0xf]
      %v255 = vld [vmem:[%s1 + $0x8] sm:$0xf]
      %v256 = vld [vmem:[%s1 + $0xc] sm:$0xf]
      %v257 = vld [vmem:[%s1 + $0x10] sm:$0xf]
      %v258 = vld [vmem:[%s1 + $0x14] sm:$0xf]
      %v259 = vld [vmem:[%s1 + $0x18] sm:$0xf]
      %v260 = vld [vmem:[%s1 + $0x1c] sm:$0xf]
      %v261 = vld [vmem:[%s1 + $0x20] sm:$0xf]
      %v262 = vld [vmem:[%s1 + $0x24] sm:$0xf]
      %v263 = vld [vmem:[%s1 + $0x28] sm:$0xf]
      %v264 = vld [vmem:[%s1 + $0x2c] sm:$0xf]
      %v265 = vld [vmem:[%s1 + $0x30] sm:$0xf]
      %v266 = vld [vmem:[%s1 + $0x34] sm:$0xf]
      %v267 = vld [vmem:[%s1 + $0x38] sm:$0xf]
      %v268 = vld [vmem:[%s1 + $0x3c] sm:$0xf]
      %v269 = vld [vmem:[%s1 + $0x40] sm:$0xf]
      %v270 = vld [vmem:[%s1 + $0x44] sm:$0xf]
      %v271 = vld [vmem:[%s1 + $0x48] sm:$0xf]
      %v272 = vld [vmem:[%s1 + $0x4c] sm:$0xf]
      %v273 = vld [vmem:[%s1 + $0x50] sm:$0xf]
      %v274 = vld [vmem:[%s1 + $0x54] sm:$0xf]
      %v275 = vld [vmem:[%s1 + $0x58] sm:$0xf]
      %v276 = vld [vmem:[%s1 + $0x5c] sm:$0xf]
      %v277 = vld [vmem:[%s1 + $0x60] sm:$0xf]
      %v278 = vld [vmem:[%s1 + $0x64] sm:$0xf]
      %v279 = vld [vmem:[%s1 + $0x68] sm:$0xf]
      %v280 = vld [vmem:[%s1 + $0x6c] sm:$0xf]
      %v281 = vld [vmem:[%s1 + $0x70] sm:$0xf]
      %v282 = vld [vmem:[%s1 + $0x74] sm:$0xf]
      %v283 = vld [vmem:[%s1 + $0x78] sm:$0xf]
      %v284 = vld [vmem:[%s1 + $0x7c] sm:$0xf]
      %v285 = vld [vmem:[%s1 + $0x80] sm:$0xf]
      %v286 = vld [vmem:[%s1 + $0x84] sm:$0xf]
      %v287 = vld [vmem:[%s1 + $0x88] sm:$0xf]
      %v288 = vld [vmem:[%s1 + $0x8c] sm:$0xf]
      %v289 = vld [vmem:[%s1 + $0x90] sm:$0xf]
      %v290 = vld [vmem:[%s1 + $0x94] sm:$0xf]
      %v291 = vld [vmem:[%s1 + $0x98] sm:$0xf]
      %v292 = vld [vmem:[%s1 + $0x9c] sm:$0xf]
      %v293 = vld [vmem:[%s1 + $0xa0] sm:$0xf]
      %v294 = vld [vmem:[%s1 + $0xa4] sm:$0xf]
      %v295 = vld [vmem:[%s1 + $0xa8] sm:$0xf]
      %v296 = vld [vmem:[%s1 + $0xac] sm:$0xf]
      %v297 = vld [vmem:[%s1 + $0xb0] sm:$0xf]
      %v298 = vld [vmem:[%s1 + $0xb4] sm:$0xf]
      %v299 = vld [vmem:[%s1 + $0xb8] sm:$0xf]
      %v300 = vld [vmem:[%s1 + $0xbc] sm:$0xf]
      %v301 = vld [vmem:[%s1 + $0xc0] sm:$0xf]
      %v302 = vld [vmem:[%s1 + $0xc4] sm:$0xf]
      %v303 = vld [vmem:[%s1 + $0xc8] sm:$0xf]
      %v304 = vld [vmem:[%s1 + $0xcc] sm:$0xf]
      %v305 = vld [vmem:[%s1 + $0xd0] sm:$0xf]
      %v306 = vld [vmem:[%s1 + $0xd4] sm:$0xf]
      %v307 = vld [vmem:[%s1 + $0xd8] sm:$0xf]
      %v308 = vld [vmem:[%s1 + $0xdc] sm:$0xf]
      %v309 = vld [vmem:[%s1 + $0xe0] sm:$0xf]
      %v310 = vld [vmem:[%s1 + $0xe4] sm:$0xf]
      %v311 = vld [vmem:[%s1 + $0xe8] sm:$0xf]
      %v312 = vld [vmem:[%s1 + $0xec] sm:$0xf]
      %v313 = vld [vmem:[%s1 + $0xf0] sm:$0xf]
      %v314 = vld [vmem:[%s1 + $0xf4] sm:$0xf]
      %v315 = vld [vmem:[%s1 + $0xf8] sm:$0xf]
      %v316 = vld [vmem:[%s1 + $0xfc] sm:$0xf]
      %v317 = vld [vmem:[%s1 + $0x100] sm:$0xf]
      %v318 = vld [vmem:[%s1 + $0x104] sm:$0xf]
      %v319 = vld [vmem:[%s1 + $0x108] sm:$0xf]
      %v320 = vld [vmem:[%s1 + $0x10c] sm:$0xf]
      %v321 = vld [vmem:[%s1 + $0x110] sm:$0xf]
      %v322 = vld [vmem:[%s1 + $0x114] sm:$0xf]
      %v323 = vld [vmem:[%s1 + $0x118] sm:$0xf]
      %v324 = vld [vmem:[%s1 + $0x11c] sm:$0xf]
      %v325 = vld [vmem:[%s1 + $0x120] sm:$0xf]
      %v326 = vld [vmem:[%s1 + $0x124] sm:$0xf]
      %v327 = vld [vmem:[%s1 + $0x128] sm:$0xf]
      %v328 = vld [vmem:[%s1 + $0x12c] sm:$0xf]
      %v329 = vld [vmem:[%s1 + $0x130] sm:$0xf]
      %v330 = vld [vmem:[%s1 + $0x134] sm:$0xf]
      %v331 = vld [vmem:[%s1 + $0x138] sm:$0xf]
      %v332 = vld [vmem:[%s1 + $0x13c] sm:$0xf]
      %v381 = vunpack.c.l.b16 %v205
      %v382 = vunpack.c.h.b16 %v205
      %v383 = vunpack.c.l.b16 %v206
      %v384 = vunpack.c.h.b16 %v206
      %v385 = vunpack.c.l.b16 %v207
      %v386 = vunpack.c.l.b16 %v208
      %v387 = vunpack.c.h.b16 %v208
      %v388 = vunpack.c.l.b16 %v209
      %v389 = vunpack.c.h.b16 %v209
      %v390 = vunpack.c.l.b16 %v210
      %v391 = vunpack.c.l.b16 %v211
      %v392 = vunpack.c.h.b16 %v211
      %v393 = vunpack.c.l.b16 %v212
      %v394 = vunpack.c.h.b16 %v212
      %v395 = vunpack.c.l.b16 %v213
      %v396 = vunpack.c.l.b16 %v214
      %v397 = vunpack.c.h.b16 %v214
      %v398 = vunpack.c.l.b16 %v215
      %v399 = vunpack.c.h.b16 %v215
      %v400 = vunpack.c.l.b16 %v216
      %v401 = vunpack.c.l.b16 %v217
      %v402 = vunpack.c.h.b16 %v217
      %v403 = vunpack.c.l.b16 %v218
      %v404 = vunpack.c.h.b16 %v218
      %v405 = vunpack.c.l.b16 %v219
      %v406 = vunpack.c.l.b16 %v220
      %v407 = vunpack.c.h.b16 %v220
      %v408 = vunpack.c.l.b16 %v221
      %v409 = vunpack.c.h.b16 %v221
      %v410 = vunpack.c.l.b16 %v222
      %v411 = vunpack.c.l.b16 %v223
      %v412 = vunpack.c.h.b16 %v223
      %v413 = vunpack.c.l.b16 %v224
      %v414 = vunpack.c.h.b16 %v224
      %v415 = vunpack.c.l.b16 %v225
      %v416 = vunpack.c.l.b16 %v226
      %v417 = vunpack.c.h.b16 %v226
      %v418 = vunpack.c.l.b16 %v227
      %v419 = vunpack.c.h.b16 %v227
      %v420 = vunpack.c.l.b16 %v228
      %v421 = vunpack.c.l.b16 %v229
      %v422 = vunpack.c.h.b16 %v229
      %v423 = vunpack.c.l.b16 %v230
      %v424 = vunpack.c.h.b16 %v230
      %v425 = vunpack.c.l.b16 %v231
      %v426 = vunpack.c.l.b16 %v232
      %v427 = vunpack.c.h.b16 %v232
      %v428 = vunpack.c.l.b16 %v233
      %v429 = vunpack.c.h.b16 %v233
      %v430 = vunpack.c.l.b16 %v234
      %v431 = vunpack.c.l.b16 %v235
      %v432 = vunpack.c.h.b16 %v235
      %v433 = vunpack.c.l.b16 %v236
      %v434 = vunpack.c.h.b16 %v236
      %v435 = vunpack.c.l.b16 %v237
      %v436 = vunpack.c.l.b16 %v238
      %v437 = vunpack.c.h.b16 %v238
      %v438 = vunpack.c.l.b16 %v239
      %v439 = vunpack.c.h.b16 %v239
      %v440 = vunpack.c.l.b16 %v240
      %v441 = vunpack.c.l.b16 %v241
      %v442 = vunpack.c.h.b16 %v241
      %v443 = vunpack.c.l.b16 %v242
      %v444 = vunpack.c.h.b16 %v242
      %v445 = vunpack.c.l.b16 %v243
      %v446 = vunpack.c.l.b16 %v244
      %v447 = vunpack.c.h.b16 %v244
      %v448 = vunpack.c.l.b16 %v245
      %v449 = vunpack.c.h.b16 %v245
      %v450 = vunpack.c.l.b16 %v246
      %v451 = vunpack.c.l.b16 %v247
      %v452 = vunpack.c.h.b16 %v247
      %v453 = vunpack.c.l.b16 %v248
      %v454 = vunpack.c.h.b16 %v248
      %v455 = vunpack.c.l.b16 %v249
      %v456 = vunpack.c.l.b16 %v250
      %v457 = vunpack.c.h.b16 %v250
      %v458 = vunpack.c.l.b16 %v251
      %v459 = vunpack.c.h.b16 %v251
      %v460 = vunpack.c.l.b16 %v252
      %v461 = vpack.c.b16 %v386, %v381
      %v462 = vpack.c.b16 %v387, %v382
      %v463 = vpack.c.b16 %v388, %v383
      %v464 = vpack.c.b16 %v389, %v384
      %v465 = vpack.c.b16 %v390, %v385
      %v466 = vpack.c.b16 %v396, %v391
      %v467 = vpack.c.b16 %v397, %v392
      %v468 = vpack.c.b16 %v398, %v393
      %v469 = vpack.c.b16 %v399, %v394
      %v470 = vpack.c.b16 %v400, %v395
      %v471 = vpack.c.b16 %v406, %v401
      %v472 = vpack.c.b16 %v407, %v402
      %v473 = vpack.c.b16 %v408, %v403
      %v474 = vpack.c.b16 %v409, %v404
      %v475 = vpack.c.b16 %v410, %v405
      %v476 = vpack.c.b16 %v416, %v411
      %v477 = vpack.c.b16 %v417, %v412
      %v478 = vpack.c.b16 %v418, %v413
      %v479 = vpack.c.b16 %v419, %v414
      %v480 = vpack.c.b16 %v420, %v415
      %v481 = vpack.c.b16 %v426, %v421
      %v482 = vpack.c.b16 %v427, %v422
      %v483 = vpack.c.b16 %v428, %v423
      %v484 = vpack.c.b16 %v429, %v424
      %v485 = vpack.c.b16 %v430, %v425
      %v486 = vpack.c.b16 %v436, %v431
      %v487 = vpack.c.b16 %v437, %v432
      %v488 = vpack.c.b16 %v438, %v433
      %v489 = vpack.c.b16 %v439, %v434
      %v490 = vpack.c.b16 %v440, %v435
      %v491 = vpack.c.b16 %v446, %v441
      %v492 = vpack.c.b16 %v447, %v442
      %v493 = vpack.c.b16 %v448, %v443
      %v494 = vpack.c.b16 %v449, %v444
      %v495 = vpack.c.b16 %v450, %v445
      %v496 = vpack.c.b16 %v456, %v451
      %v497 = vpack.c.b16 %v457, %v452
      %v498 = vpack.c.b16 %v458, %v453
      %v499 = vpack.c.b16 %v459, %v454
      %v500 = vpack.c.b16 %v460, %v455
      %v621 = vunpack.c.l.b16 %v253
      %v622 = vunpack.c.l.b16 %v254
      %v623 = vunpack.c.l.b16 %v255
      %v624 = vunpack.c.l.b16 %v256
      %v625 = vunpack.c.l.b16 %v257
      %v626 = vunpack.c.l.b16 %v258
      %v627 = vunpack.c.l.b16 %v259
      %v628 = vunpack.c.l.b16 %v260
      %v629 = vunpack.c.l.b16 %v261
      %v630 = vunpack.c.l.b16 %v262
      %v631 = vunpack.c.l.b16 %v263
      %v632 = vunpack.c.l.b16 %v264
      %v633 = vunpack.c.l.b16 %v265
      %v634 = vunpack.c.l.b16 %v266
      %v635 = vunpack.c.l.b16 %v267
      %v636 = vunpack.c.l.b16 %v268
      %v637 = vunpack.c.l.b16 %v269
      %v638 = vunpack.c.l.b16 %v270
      %v639 = vunpack.c.l.b16 %v271
      %v640 = vunpack.c.l.b16 %v272
      %v641 = vunpack.c.l.b16 %v273
      %v642 = vunpack.c.l.b16 %v274
      %v643 = vunpack.c.l.b16 %v275
      %v644 = vunpack.c.l.b16 %v276
      %v645 = vunpack.c.l.b16 %v277
      %v646 = vunpack.c.l.b16 %v278
      %v647 = vunpack.c.l.b16 %v279
      %v648 = vunpack.c.l.b16 %v280
      %v649 = vunpack.c.l.b16 %v281
      %v650 = vunpack.c.l.b16 %v282
      %v651 = vunpack.c.l.b16 %v283
      %v652 = vunpack.c.l.b16 %v284
      %v653 = vunpack.c.l.b16 %v285
      %v654 = vunpack.c.l.b16 %v286
      %v655 = vunpack.c.l.b16 %v287
      %v656 = vunpack.c.l.b16 %v288
      %v657 = vunpack.c.l.b16 %v289
      %v658 = vunpack.c.l.b16 %v290
      %v659 = vunpack.c.l.b16 %v291
      %v660 = vunpack.c.l.b16 %v292
      %v661 = vunpack.c.l.b16 %v293
      %v662 = vunpack.c.l.b16 %v294
      %v663 = vunpack.c.l.b16 %v295
      %v664 = vunpack.c.l.b16 %v296
      %v665 = vunpack.c.l.b16 %v297
      %v666 = vunpack.c.l.b16 %v298
      %v667 = vunpack.c.l.b16 %v299
      %v668 = vunpack.c.l.b16 %v300
      %v669 = vunpack.c.l.b16 %v301
      %v670 = vunpack.c.l.b16 %v302
      %v671 = vunpack.c.l.b16 %v303
      %v672 = vunpack.c.l.b16 %v304
      %v673 = vunpack.c.l.b16 %v305
      %v674 = vunpack.c.l.b16 %v306
      %v675 = vunpack.c.l.b16 %v307
      %v676 = vunpack.c.l.b16 %v308
      %v677 = vunpack.c.l.b16 %v309
      %v678 = vunpack.c.l.b16 %v310
      %v679 = vunpack.c.l.b16 %v311
      %v680 = vunpack.c.l.b16 %v312
      %v681 = vunpack.c.l.b16 %v313
      %v682 = vunpack.c.l.b16 %v314
      %v683 = vunpack.c.l.b16 %v315
      %v684 = vunpack.c.l.b16 %v316
      %v685 = vunpack.c.l.b16 %v317
      %v686 = vunpack.c.l.b16 %v318
      %v687 = vunpack.c.l.b16 %v319
      %v688 = vunpack.c.l.b16 %v320
      %v689 = vunpack.c.l.b16 %v321
      %v690 = vunpack.c.l.b16 %v322
      %v691 = vunpack.c.l.b16 %v323
      %v692 = vunpack.c.l.b16 %v324
      %v693 = vunpack.c.l.b16 %v325
      %v694 = vunpack.c.l.b16 %v326
      %v695 = vunpack.c.l.b16 %v327
      %v696 = vunpack.c.l.b16 %v328
      %v697 = vunpack.c.l.b16 %v329
      %v698 = vunpack.c.l.b16 %v330
      %v699 = vunpack.c.l.b16 %v331
      %v700 = vunpack.c.l.b16 %v332
      %v701 = vpack.c.b16 %v622, %v621
      %v702 = vpack.c.b16 %v624, %v623
      %v703 = vpack.c.b16 %v626, %v625
      %v704 = vpack.c.b16 %v628, %v627
      %v705 = vpack.c.b16 %v630, %v629
      %v706 = vpack.c.b16 %v632, %v631
      %v707 = vpack.c.b16 %v634, %v633
      %v708 = vpack.c.b16 %v636, %v635
      %v709 = vpack.c.b16 %v638, %v637
      %v710 = vpack.c.b16 %v640, %v639
      %v711 = vpack.c.b16 %v642, %v641
      %v712 = vpack.c.b16 %v644, %v643
      %v713 = vpack.c.b16 %v646, %v645
      %v714 = vpack.c.b16 %v648, %v647
      %v715 = vpack.c.b16 %v650, %v649
      %v716 = vpack.c.b16 %v652, %v651
      %v717 = vpack.c.b16 %v654, %v653
      %v718 = vpack.c.b16 %v656, %v655
      %v719 = vpack.c.b16 %v658, %v657
      %v720 = vpack.c.b16 %v660, %v659
      %v721 = vpack.c.b16 %v662, %v661
      %v722 = vpack.c.b16 %v664, %v663
      %v723 = vpack.c.b16 %v666, %v665
      %v724 = vpack.c.b16 %v668, %v667
      %v725 = vpack.c.b16 %v670, %v669
      %v726 = vpack.c.b16 %v672, %v671
      %v727 = vpack.c.b16 %v674, %v673
      %v728 = vpack.c.b16 %v676, %v675
      %v729 = vpack.c.b16 %v678, %v677
      %v730 = vpack.c.b16 %v680, %v679
      %v731 = vpack.c.b16 %v682, %v681
      %v732 = vpack.c.b16 %v684, %v683
      %v733 = vpack.c.b16 %v686, %v685
      %v734 = vpack.c.b16 %v688, %v687
      %v735 = vpack.c.b16 %v690, %v689
      %v736 = vpack.c.b16 %v692, %v691
      %v737 = vpack.c.b16 %v694, %v693
      %v738 = vpack.c.b16 %v696, %v695
      %v739 = vpack.c.b16 %v698, %v697
      %v740 = vpack.c.b16 %v700, %v699
      %781 = vmatprep.subr.bf16.mxu0 0
      %782 = vmatpush1.bf16.msra.mxu0 %v708
      %783 = vmatprep.subr.bf16.mxu0 0
      %784 = vmatpush1.bf16.msra.mxu0 %v707
      %785 = vmatprep.subr.bf16.mxu0 0
      %786 = vmatpush1.bf16.msra.mxu0 %v706
      %787 = vmatprep.subr.bf16.mxu0 0
      %788 = vmatpush1.bf16.msra.mxu0 %v705
      %789 = vmatprep.subr.bf16.mxu0 0
      %790 = vmatpush1.bf16.msra.mxu0 %v704
      %791 = vmatprep.subr.bf16.mxu0 0
      %792 = vmatpush1.bf16.msra.mxu0 %v703
      %793 = vmatprep.subr.bf16.mxu0 0
      %794 = vmatpush1.bf16.msra.mxu0 %v702
      %795 = vmatprep.subr.bf16.mxu0 0
      %796 = vmatpush1.bf16.msra.mxu0 %v701
      %797 = vmatprep.subr.bf16.mxu0 0
      %798 = vmatpush2.bf16.msra.mxu0 %v716
      %799 = vmatprep.subr.bf16.mxu0 0
      %800 = vmatpush2.bf16.msra.mxu0 %v715
      %801 = vmatprep.subr.bf16.mxu0 0
      %802 = vmatpush2.bf16.msra.mxu0 %v714
      %803 = vmatprep.subr.bf16.mxu0 0
      %804 = vmatpush2.bf16.msra.mxu0 %v713
      %805 = vmatprep.subr.bf16.mxu0 0
      %806 = vmatpush2.bf16.msra.mxu0 %v712
      %807 = vmatprep.subr.bf16.mxu0 0
      %808 = vmatpush2.bf16.msra.mxu0 %v711
      %809 = vmatprep.subr.bf16.mxu0 0
      %810 = vmatpush2.bf16.msra.mxu0 %v710
      %811 = vmatprep.subr.bf16.mxu0 0
      %812 = vmatpush2.bf16.msra.mxu0 %v709
      %813 = vmatprep.mubr.bf16.mxu0 %v462
      %814 = vmatmul.mubr.bf16.gmra.mxu0 %v461
      %v815 = vpop.f32.mrf.mxu0
      %v816 = vadd.f32 0.0, %v815
      %v817 = vpop.f32.mrf.mxu0
      %v818 = vpop.f32.mrf.mxu0
      %v819 = vadd.f32 0.0, %v818
      %v820 = vpop.f32.mrf.mxu0
      %821 = vmatprep.mubr.bf16.mxu0 %v467
      %822 = vmatmul.mubr.bf16.gmra.mxu0 %v466
      %v823 = vpop.f32.mrf.mxu0
      %v824 = vadd.f32 0.0, %v823
      %v825 = vpop.f32.mrf.mxu0
      %v826 = vpop.f32.mrf.mxu0
      %v827 = vadd.f32 0.0, %v826
      %v828 = vpop.f32.mrf.mxu0
      %829 = vmatprep.mubr.bf16.mxu0 %v472
      %830 = vmatmul.mubr.bf16.gmra.mxu0 %v471
      %v831 = vpop.f32.mrf.mxu0
      %v832 = vadd.f32 0.0, %v831
      %v833 = vpop.f32.mrf.mxu0
      %v834 = vpop.f32.mrf.mxu0
      %v835 = vadd.f32 0.0, %v834
      %v836 = vpop.f32.mrf.mxu0
      %837 = vmatprep.mubr.bf16.mxu0 %v477
      %838 = vmatmul.mubr.bf16.gmra.mxu0 %v476
      %v839 = vpop.f32.mrf.mxu0
      %v840 = vadd.f32 0.0, %v839
      %v841 = vpop.f32.mrf.mxu0
      %v842 = vpop.f32.mrf.mxu0
      %v843 = vadd.f32 0.0, %v842
      %v844 = vpop.f32.mrf.mxu0
      %845 = vmatprep.mubr.bf16.mxu0 %v482
      %846 = vmatmul.mubr.bf16.gmra.mxu0 %v481
      %v847 = vpop.f32.mrf.mxu0
      %v848 = vadd.f32 0.0, %v847
      %v849 = vpop.f32.mrf.mxu0
      %v850 = vpop.f32.mrf.mxu0
      %v851 = vadd.f32 0.0, %v850
      %v852 = vpop.f32.mrf.mxu0
      %853 = vmatprep.mubr.bf16.mxu0 %v487
      %854 = vmatmul.mubr.bf16.gmra.mxu0 %v486
      %v855 = vpop.f32.mrf.mxu0
      %v856 = vadd.f32 0.0, %v855
      %v857 = vpop.f32.mrf.mxu0
      %v858 = vpop.f32.mrf.mxu0
      %v859 = vadd.f32 0.0, %v858
      %v860 = vpop.f32.mrf.mxu0
      %861 = vmatprep.mubr.bf16.mxu0 %v492
      %862 = vmatmul.mubr.bf16.gmra.mxu0 %v491
      %v863 = vpop.f32.mrf.mxu0
      %v864 = vadd.f32 0.0, %v863
      %v865 = vpop.f32.mrf.mxu0
      %v866 = vpop.f32.mrf.mxu0
      %v867 = vadd.f32 0.0, %v866
      %v868 = vpop.f32.mrf.mxu0
      %869 = vmatprep.mubr.bf16.mxu0 %v497
      %870 = vmatmul.mubr.bf16.gmra.mxu0 %v496
      %v871 = vpop.f32.mrf.mxu0
      %v872 = vadd.f32 0.0, %v871
      %v873 = vpop.f32.mrf.mxu0
      %v874 = vpop.f32.mrf.mxu0
      %v875 = vadd.f32 0.0, %v874
      %v876 = vpop.f32.mrf.mxu0
      %877 = vdwg.mxu0
      %878 = vmatprep.subr.bf16.mxu0 0
      %879 = vmatpush1.bf16.msra.mxu0 %v724
      %880 = vmatprep.subr.bf16.mxu0 0
      %881 = vmatpush1.bf16.msra.mxu0 %v723
      %882 = vmatprep.subr.bf16.mxu0 0
      %883 = vmatpush1.bf16.msra.mxu0 %v722
      %884 = vmatprep.subr.bf16.mxu0 0
      %885 = vmatpush1.bf16.msra.mxu0 %v721
      %886 = vmatprep.subr.bf16.mxu0 0
      %887 = vmatpush1.bf16.msra.mxu0 %v720
      %888 = vmatprep.subr.bf16.mxu0 0
      %889 = vmatpush1.bf16.msra.mxu0 %v719
      %890 = vmatprep.subr.bf16.mxu0 0
      %891 = vmatpush1.bf16.msra.mxu0 %v718
      %892 = vmatprep.subr.bf16.mxu0 0
      %893 = vmatpush1.bf16.msra.mxu0 %v717
      %894 = vmatprep.subr.bf16.mxu0 0
      %895 = vmatpush2.bf16.msra.mxu0 %v732
      %896 = vmatprep.subr.bf16.mxu0 0
      %897 = vmatpush2.bf16.msra.mxu0 %v731
      %898 = vmatprep.subr.bf16.mxu0 0
      %899 = vmatpush2.bf16.msra.mxu0 %v730
      %900 = vmatprep.subr.bf16.mxu0 0
      %901 = vmatpush2.bf16.msra.mxu0 %v729
      %902 = vmatprep.subr.bf16.mxu0 0
      %903 = vmatpush2.bf16.msra.mxu0 %v728
      %904 = vmatprep.subr.bf16.mxu0 0
      %905 = vmatpush2.bf16.msra.mxu0 %v727
      %906 = vmatprep.subr.bf16.mxu0 0
      %907 = vmatpush2.bf16.msra.mxu0 %v726
      %908 = vmatprep.subr.bf16.mxu0 0
      %909 = vmatpush2.bf16.msra.mxu0 %v725
      %910 = vmatprep.mubr.bf16.mxu0 %v464
      %911 = vmatmul.mubr.bf16.gmra.mxu0 %v463
      %v912 = vpop.f32.mrf.mxu0
      %v913 = vadd.f32 %v816, %v912
      %v914 = vpop.f32.mrf.mxu0
      %v915 = vpop.f32.mrf.mxu0
      %v916 = vadd.f32 %v819, %v915
      %v917 = vpop.f32.mrf.mxu0
      %918 = vmatprep.mubr.bf16.mxu0 %v469
      %919 = vmatmul.mubr.bf16.gmra.mxu0 %v468
      %v920 = vpop.f32.mrf.mxu0
      %v921 = vadd.f32 %v824, %v920
      %v922 = vpop.f32.mrf.mxu0
      %v923 = vpop.f32.mrf.mxu0
      %v924 = vadd.f32 %v827, %v923
      %v925 = vpop.f32.mrf.mxu0
      %926 = vmatprep.mubr.bf16.mxu0 %v474
      %927 = vmatmul.mubr.bf16.gmra.mxu0 %v473
      %v928 = vpop.f32.mrf.mxu0
      %v929 = vadd.f32 %v832, %v928
      %v930 = vpop.f32.mrf.mxu0
      %v931 = vpop.f32.mrf.mxu0
      %v932 = vadd.f32 %v835, %v931
      %v933 = vpop.f32.mrf.mxu0
      %934 = vmatprep.mubr.bf16.mxu0 %v479
      %935 = vmatmul.mubr.bf16.gmra.mxu0 %v478
      %v936 = vpop.f32.mrf.mxu0
      %v937 = vadd.f32 %v840, %v936
      %v938 = vpop.f32.mrf.mxu0
      %v939 = vpop.f32.mrf.mxu0
      %v940 = vadd.f32 %v843, %v939
      %v941 = vpop.f32.mrf.mxu0
      %942 = vmatprep.mubr.bf16.mxu0 %v484
      %943 = vmatmul.mubr.bf16.gmra.mxu0 %v483
      %v944 = vpop.f32.mrf.mxu0
      %v945 = vadd.f32 %v848, %v944
      %v946 = vpop.f32.mrf.mxu0
      %v947 = vpop.f32.mrf.mxu0
      %v948 = vadd.f32 %v851, %v947
      %v949 = vpop.f32.mrf.mxu0
      %950 = vmatprep.mubr.bf16.mxu0 %v489
      %951 = vmatmul.mubr.bf16.gmra.mxu0 %v488
      %v952 = vpop.f32.mrf.mxu0
      %v953 = vadd.f32 %v856, %v952
      %v954 = vpop.f32.mrf.mxu0
      %v955 = vpop.f32.mrf.mxu0
      %v956 = vadd.f32 %v859, %v955
      %v957 = vpop.f32.mrf.mxu0
      %958 = vmatprep.mubr.bf16.mxu0 %v494
      %959 = vmatmul.mubr.bf16.gmra.mxu0 %v493
      %v960 = vpop.f32.mrf.mxu0
      %v961 = vadd.f32 %v864, %v960
      %v962 = vpop.f32.mrf.mxu0
      %v963 = vpop.f32.mrf.mxu0
      %v964 = vadd.f32 %v867, %v963
      %v965 = vpop.f32.mrf.mxu0
      %966 = vmatprep.mubr.bf16.mxu0 %v499
      %967 = vmatmul.mubr.bf16.gmra.mxu0 %v498
      %v968 = vpop.f32.mrf.mxu0
      %v969 = vadd.f32 %v872, %v968
      %v970 = vpop.f32.mrf.mxu0
      %v971 = vpop.f32.mrf.mxu0
      %v972 = vadd.f32 %v875, %v971
      %v973 = vpop.f32.mrf.mxu0
      %974 = vdwg.mxu0
      %975 = vmatprep.subr.bf16.mxu0 0
      %976 = vmatpush1.bf16.msra.mxu0 %v740
      %977 = vmatprep.subr.bf16.mxu0 0
      %978 = vmatpush1.bf16.msra.mxu0 %v739
      %979 = vmatprep.subr.bf16.mxu0 0
      %980 = vmatpush1.bf16.msra.mxu0 %v738
      %981 = vmatprep.subr.bf16.mxu0 0
      %982 = vmatpush1.bf16.msra.mxu0 %v737
      %983 = vmatprep.subr.bf16.mxu0 0
      %984 = vmatpush1.bf16.msra.mxu0 %v736
      %985 = vmatprep.subr.bf16.mxu0 0
      %986 = vmatpush1.bf16.msra.mxu0 %v735
      %987 = vmatprep.subr.bf16.mxu0 0
      %988 = vmatpush1.bf16.msra.mxu0 %v734
      %989 = vmatprep.subr.bf16.mxu0 0
      %990 = vmatpush1.bf16.msra.mxu0 %v733
      %991 = vmatprep.subr.bf16.mxu0 0
      %992 = vmatpush2.bf16.msra.mxu0 0
      %993 = vmatprep.subr.bf16.mxu0 0
      %994 = vmatpush2.bf16.msra.mxu0 0
      %995 = vmatprep.subr.bf16.mxu0 0
      %996 = vmatpush2.bf16.msra.mxu0 0
      %997 = vmatprep.subr.bf16.mxu0 0
      %998 = vmatpush2.bf16.msra.mxu0 0
      %999 = vmatprep.subr.bf16.mxu0 0
      %1000 = vmatpush2.bf16.msra.mxu0 0
      %1001 = vmatprep.subr.bf16.mxu0 0
      %1002 = vmatpush2.bf16.msra.mxu0 0
      %1003 = vmatprep.subr.bf16.mxu0 0
      %1004 = vmatpush2.bf16.msra.mxu0 0
      %1005 = vmatprep.subr.bf16.mxu0 0
      %1006 = vmatpush2.bf16.msra.mxu0 0
      %1007 = vmatprep.mubr.bf16.mxu0 0
      %1008 = vmatmul.mubr.bf16.gmra.mxu0 %v465
      %v1009 = vpop.f32.mrf.mxu0
      %v1010 = vadd.f32 %v913, %v1009
      %v1011 = vpop.f32.mrf.mxu0
      %v1012 = vpop.f32.mrf.mxu0
      %v1013 = vadd.f32 %v916, %v1012
      %v1014 = vpop.f32.mrf.mxu0
      %1015 = vmatprep.mubr.bf16.mxu0 0
      %1016 = vmatmul.mubr.bf16.gmra.mxu0 %v470
      %v1017 = vpop.f32.mrf.mxu0
      %v1018 = vadd.f32 %v921, %v1017
      %v1019 = vpop.f32.mrf.mxu0
      %v1020 = vpop.f32.mrf.mxu0
      %v1021 = vadd.f32 %v924, %v1020
      %v1022 = vpop.f32.mrf.mxu0
      %1023 = vmatprep.mubr.bf16.mxu0 0
      %1024 = vmatmul.mubr.bf16.gmra.mxu0 %v475
      %v1025 = vpop.f32.mrf.mxu0
      %v1026 = vadd.f32 %v929, %v1025
      %v1027 = vpop.f32.mrf.mxu0
      %v1028 = vpop.f32.mrf.mxu0
      %v1029 = vadd.f32 %v932, %v1028
      %v1030 = vpop.f32.mrf.mxu0
      %1031 = vmatprep.mubr.bf16.mxu0 0
      %1032 = vmatmul.mubr.bf16.gmra.mxu0 %v480
      %v1033 = vpop.f32.mrf.mxu0
      %v1034 = vadd.f32 %v937, %v1033
      %v1035 = vpop.f32.mrf.mxu0
      %v1036 = vpop.f32.mrf.mxu0
      %v1037 = vadd.f32 %v940, %v1036
      %v1038 = vpop.f32.mrf.mxu0
      %1039 = vmatprep.mubr.bf16.mxu0 0
      %1040 = vmatmul.mubr.bf16.gmra.mxu0 %v485
      %v1041 = vpop.f32.mrf.mxu0
      %v1042 = vadd.f32 %v945, %v1041
      %v1043 = vpop.f32.mrf.mxu0
      %v1044 = vpop.f32.mrf.mxu0
      %v1045 = vadd.f32 %v948, %v1044
      %v1046 = vpop.f32.mrf.mxu0
      %1047 = vmatprep.mubr.bf16.mxu0 0
      %1048 = vmatmul.mubr.bf16.gmra.mxu0 %v490
      %v1049 = vpop.f32.mrf.mxu0
      %v1050 = vadd.f32 %v953, %v1049
      %v1051 = vpop.f32.mrf.mxu0
      %v1052 = vpop.f32.mrf.mxu0
      %v1053 = vadd.f32 %v956, %v1052
      %v1054 = vpop.f32.mrf.mxu0
      %1055 = vmatprep.mubr.bf16.mxu0 0
      %1056 = vmatmul.mubr.bf16.gmra.mxu0 %v495
      %v1057 = vpop.f32.mrf.mxu0
      %v1058 = vadd.f32 %v961, %v1057
      %v1059 = vpop.f32.mrf.mxu0
      %v1060 = vpop.f32.mrf.mxu0
      %v1061 = vadd.f32 %v964, %v1060
      %v1062 = vpop.f32.mrf.mxu0
      %1063 = vmatprep.mubr.bf16.mxu0 0
      %1064 = vmatmul.mubr.bf16.gmra.mxu0 %v500
      %v1065 = vpop.f32.mrf.mxu0
      %v1066 = vadd.f32 %v969, %v1065
      %v1067 = vpop.f32.mrf.mxu0
      %v1068 = vpop.f32.mrf.mxu0
      %v1069 = vadd.f32 %v972, %v1068
      %v1070 = vpop.f32.mrf.mxu0
      %1071 = vdwg.mxu0
      %v1072 = vld [vmem:[%s2] sm:$0x1]
      %v1074 = vlaneseq
      %v1075 = vshrl.u32 %v1074, 7
      %v1076 = vsub.s32 0, %v1075
      %v1077 = vrot.slane %v1072, %v1076
      %v1079 = vmul.f32 %v1010, %v1077
      %v1080 = vmul.f32 %v1013, %v1077
      %v1081 = vmul.f32 %v1018, %v1077
      %v1082 = vmul.f32 %v1021, %v1077
      %v1083 = vmul.f32 %v1026, %v1077
      %v1084 = vmul.f32 %v1029, %v1077
      %v1085 = vmul.f32 %v1034, %v1077
      %v1086 = vmul.f32 %v1037, %v1077
      %v1087 = vmul.f32 %v1042, %v1077
      %v1088 = vmul.f32 %v1045, %v1077
      %v1089 = vmul.f32 %v1050, %v1077
      %v1090 = vmul.f32 %v1053, %v1077
      %v1091 = vmul.f32 %v1058, %v1077
      %v1092 = vmul.f32 %v1061, %v1077
      %v1093 = vmul.f32 %v1066, %v1077
      %v1094 = vmul.f32 %v1069, %v1077
      %v1095 = vld [vmem:[%s3] sm:$0x1]
      %v1097 = vlaneseq
      %v1098 = vshrl.u32 %v1097, 7
      %v1099 = vsub.s32 0, %v1098
      %v1100 = vrot.slane %v1095, %v1099
      %v1102 = vadd.f32 %v1079, %v1100
      %v1103 = vadd.f32 %v1080, %v1100
      %v1104 = vadd.f32 %v1081, %v1100
      %v1105 = vadd.f32 %v1082, %v1100
      %v1106 = vadd.f32 %v1083, %v1100
      %v1107 = vadd.f32 %v1084, %v1100
      %v1108 = vadd.f32 %v1085, %v1100
      %v1109 = vadd.f32 %v1086, %v1100
      %v1110 = vadd.f32 %v1087, %v1100
      %v1111 = vadd.f32 %v1088, %v1100
      %v1112 = vadd.f32 %v1089, %v1100
      %v1113 = vadd.f32 %v1090, %v1100
      %v1114 = vadd.f32 %v1091, %v1100
      %v1115 = vadd.f32 %v1092, %v1100
      %v1116 = vadd.f32 %v1093, %v1100
      %v1117 = vadd.f32 %v1094, %v1100
      %v1118 = vpack.c.bf16 %v1103, %v1102
      %v1119 = vpack.c.bf16 %v1105, %v1104
      %v1120 = vpack.c.bf16 %v1107, %v1106
      %v1121 = vpack.c.bf16 %v1109, %v1108
      %v1122 = vpack.c.bf16 %v1111, %v1110
      %v1123 = vpack.c.bf16 %v1113, %v1112
      %v1124 = vpack.c.bf16 %v1115, %v1114
      %v1125 = vpack.c.bf16 %v1117, %v1116
      %v1134 = vunpack.c.l.b16 %v1118
      %v1135 = vunpack.c.h.b16 %v1118
      %v1136 = vunpack.c.l.b16 %v1119
      %v1137 = vunpack.c.h.b16 %v1119
      %v1138 = vunpack.c.l.b16 %v1120
      %v1139 = vunpack.c.h.b16 %v1120
      %v1140 = vunpack.c.l.b16 %v1121
      %v1141 = vunpack.c.h.b16 %v1121
      %v1142 = vunpack.c.l.b16 %v1122
      %v1143 = vunpack.c.h.b16 %v1122
      %v1144 = vunpack.c.l.b16 %v1123
      %v1145 = vunpack.c.h.b16 %v1123
      %v1146 = vunpack.c.l.b16 %v1124
      %v1147 = vunpack.c.h.b16 %v1124
      %v1148 = vunpack.c.l.b16 %v1125
      %v1149 = vunpack.c.h.b16 %v1125
      %v1150 = vpack.c.b16 %v1134, %v1134
      %v1151 = vpack.c.b16 %v1135, %v1135
      %v1152 = vpack.c.b16 %v1136, %v1136
      %v1153 = vpack.c.b16 %v1137, %v1137
      %v1154 = vpack.c.b16 %v1138, %v1138
      %v1155 = vpack.c.b16 %v1139, %v1139
      %v1156 = vpack.c.b16 %v1140, %v1140
      %v1157 = vpack.c.b16 %v1141, %v1141
      %v1158 = vpack.c.b16 %v1142, %v1142
      %v1159 = vpack.c.b16 %v1143, %v1143
      %v1160 = vpack.c.b16 %v1144, %v1144
      %v1161 = vpack.c.b16 %v1145, %v1145
      %v1162 = vpack.c.b16 %v1146, %v1146
      %v1163 = vpack.c.b16 %v1147, %v1147
      %v1164 = vpack.c.b16 %v1148, %v1148
      %v1165 = vpack.c.b16 %v1149, %v1149
      %vm1182 = vcmask 257024
      %1183 = vst.msk [vmem:[%s202] sm:$0xf] %vm1182, %v1150
      %1184 = vst.msk [vmem:[%s202 + $0x4] sm:$0xf] %vm1182, %v1151
      %1185 = vst.msk [vmem:[%s202 + $0x8] sm:$0xf] %vm1182, %v1152
      %1186 = vst.msk [vmem:[%s202 + $0xc] sm:$0xf] %vm1182, %v1153
      %1187 = vst.msk [vmem:[%s202 + $0x10] sm:$0xf] %vm1182, %v1154
      %1188 = vst.msk [vmem:[%s202 + $0x14] sm:$0xf] %vm1182, %v1155
      %1189 = vst.msk [vmem:[%s202 + $0x18] sm:$0xf] %vm1182, %v1156
      %1190 = vst.msk [vmem:[%s202 + $0x1c] sm:$0xf] %vm1182, %v1157
      %1191 = vst.msk [vmem:[%s202 + $0x20] sm:$0xf] %vm1182, %v1158
      %1192 = vst.msk [vmem:[%s202 + $0x24] sm:$0xf] %vm1182, %v1159
      %1193 = vst.msk [vmem:[%s202 + $0x28] sm:$0xf] %vm1182, %v1160
      %1194 = vst.msk [vmem:[%s202 + $0x2c] sm:$0xf] %vm1182, %v1161
      %1195 = vst.msk [vmem:[%s202 + $0x30] sm:$0xf] %vm1182, %v1162
      %1196 = vst.msk [vmem:[%s202 + $0x34] sm:$0xf] %vm1182, %v1163
      %1197 = vst.msk [vmem:[%s202 + $0x38] sm:$0xf] %vm1182, %v1164
      %1198 = vst.msk [vmem:[%s202 + $0x3c] sm:$0xf] %vm1182, %v1165
      %s1199 = smul.u32 16, %s15
      %p1200 = scmp.lt.s32.totalorder %s1199, 63
      %s1201 = scalar_select %p1200, %s1199, 63
      %s1202 = smul.addr %s1201, 4
      %s1203 = scalar_lea.vmem %s4, %s1202
      // Predicated region
      $region37: #{_lambda_.2} parent=35 // pred_check
        %p1204 = pneg %p122
      $region38: #{_lambda_.2} parent=35 // pred_check_branch
        %1206 = sbr.rel (%p1204) target = $region40
      $region39: #{_lambda_.2} parent=35 // pred_region
        %s1207 = smul.u32 16, %s15
      $region40: #{_lambda_.2} parent=35 // pred_fallthru
        _
    $region36: #{_lambda_.2} parent=5 // pred_fallthru
      _
    %p1208 = scmp.le.s32.totalorder 2, %s10
    // Predicated region
    $region41: #{_lambda_.2} parent=5 // pred_check
      %p1209 = pneg %p1208
    $region42: #{_lambda_.2} parent=5 // pred_check_branch
      %1211 = sbr.rel (%p1209) target = $region44
    $region43: #{_lambda_.2} parent=5 // pred_region
      %s1212 = ssub.s32 %s10, 2
      // Predicated region
      $region45: #{_lambda_.2} parent=43 // pred_check
        %p1213 = pneg %p128
      $region46: #{_lambda_.2} parent=43 // pred_check_branch
        %1215 = sbr.rel (%p1213) target = $region48
      $region47: #{_lambda_.2} parent=43 // pred_region
        %s1216 = smul.u32 16, %s16
        %p1217 = scmp.lt.s32.totalorder %s1216, 63
        %s1218 = scalar_select %p1217, %s1216, 63
        %s1219 = smul.addr %s1218, 4
        %s1220 = scalar_lea.vmem %s4, %s1219
      $region48: #{_lambda_.2} parent=43 // pred_fallthru
        _
    $region44: #{_lambda_.2} parent=5 // pred_fallthru
      _
  $region6: #{_lambda_.2} parent=0 // loop_footer
    %s14 = sadd.s32 1, %s10
  $region7: #{_lambda_.2} parent=0 // loop_footer_branch
    %9 = sbr.rel target = $region3
  $region8: #{_lambda_.2} parent=0 // loop_exit
    _

// kernel: _lambda_.3
$region0: #{_lambda_.3}
  #allocation0 [shape = 'u32[]', space=smem, size = 0x4, offset = 0x4, fixed_abs, tag = 'smem constant byte address 0x4 - core index']
  #allocation1 [shape = 'u32[144,128]{1,0:T(1,128)}', space=vmem, size = 0x12000, scoped, tag = 'internal scratch']
  %s0 = inlined_call_operand.vmem [shape: bf16[512,640], index: 0, kind: input, shape index: {}]
  %s1 = inlined_call_operand.vmem [shape: bf16[640,32], index: 1, kind: input, shape index: {}]
  %s2 = inlined_call_operand.vmem [shape: f32[1,32], index: 2, kind: input, shape index: {}, may-alias: {2,7}]
  %s3 = inlined_call_operand.vmem [shape: f32[1,32], index: 3, kind: input, shape index: {}, may-alias: {3,8}]
  %s4 = inlined_call_operand.vmem [shape: bf16[512,32], index: 4, kind: input, shape index: {}]
  %s5 = inlined_call_operand.vmem [shape: bf16[512,32], index: 5, kind: input, shape index: {}]
  %s6 = inlined_call_operand.vmem [shape: bf16[32,32], index: 6, kind: input, shape index: {}]
  %s7 = inlined_call_operand.vmem [shape: f32[1,32], index: 7, kind: input, shape index: {}, may-alias: {2,7}]
  %s8 = inlined_call_operand.vmem [shape: f32[1,32], index: 8, kind: input, shape index: {}, may-alias: {3,8}]
  %s9 = inlined_call_operand.vmem [shape: f32[512,32], index: 9, kind: output, shape index: {}]
  %s10 = sld [smem:[#allocation0]]
  $region69: #{_lambda_.3} parent=0
    _
  %s12 = ssub.s32 1, %s10
  %s13 = scalar_select 0, %s12, %s10
  loop: start=0, step=1, limit=6
  $region2: #{_lambda_.3} parent=0 // loop_pre_header
    _
  $region3: #{_lambda_.3} parent=0 // loop_header
    %s15 = sphi 0, %s19
    %p16 = scmp.ge.s32.totalorder %s15, 6
    %s25 = sphi 0, %s27
    %s28 = sphi 0, %s25
    %s29 = sphi 0, %s28
    %s45 = sphi 0, %s29
    %s49 = sphi 0, %s49
    %s51 = sphi 0, %s49
    %s52 = sphi 0, %s51
    %s66 = sphi 0, %s52
    %s70 = sphi 0, %s70
    %s72 = sphi 0, %s70
    %s73 = sphi 0, %s72
    %s87 = sphi 0, %s73
    %s91 = sphi 0, %s91
    %s93 = sphi 0, %s91
    %s94 = sphi 0, %s93
    %s108 = sphi 0, %s94
    %s114 = sphi 0, %s116
    %s117 = sphi 0, %s114
    %s118 = sphi 0, %s117
    %s134 = sphi 0, %s118
    %s140 = sphi 0, %s142
    %s143 = sphi 0, %s140
    %s144 = sphi 0, %s143
    %s160 = sphi 0, %s144
    %s164 = sphi 0, %s164
    %s166 = sphi 0, %s164
    %s167 = sphi 0, %s166
    %s181 = sphi 0, %s167
    %s185 = sphi 0, %s185
    %s187 = sphi 0, %s185
    %s188 = sphi 0, %s187
    %s202 = sphi 0, %s188
    %s206 = sphi 0, %s206
    %s208 = sphi 0, %s206
    %s209 = sphi 0, %s208
    %s223 = sphi 0, %s209
    %s229 = sphi 0, %s231
    %s232 = sphi 0, %s229
    %s233 = sphi 0, %s232
    %s249 = sphi 0, %s233
  $region4: #{_lambda_.3} parent=0 // loop_header_branch
    %18 = sbr.rel (%p16) target = $region8
  $region5: #{_lambda_.3} parent=0 // loop_body
    %s20 = ssub.s32 %s15, 1
    %s21 = ssub.s32 %s15, 2
    %s22 = sadd.s32 %s15, 1
    %s23 = ssub.s32 %s15, %s22
    %p24 = scmp.eq.s32.totalorder %s23, 0
    %s26 = sadd.s32 %s25, 1
    %s27 = scalar_select %p24, %s25, %s26
    %p30 = pneg %p24
    %p31 = scmp.eq.s32.totalorder %s15, 3
    %p32 = por %p30, %p31
    %p33 = scmp.ne.s32.totalorder %s25, %s28
    %p34 = scmp.eq.s32.totalorder %s15, 0
    %p35 = por %p33, %p34
    %p36 = scmp.ne.s32.totalorder %s25, %s28
    %p37 = scmp.eq.s32.totalorder %s20, 3
    %p38 = por %p36, %p37
    %p39 = scmp.ne.s32.totalorder %s28, %s29
    %p40 = scmp.eq.s32.totalorder %s20, 0
    %p41 = por %p39, %p40
    %p42 = scmp.ne.s32.totalorder %s28, %s29
    %p43 = scmp.eq.s32.totalorder %s21, 3
    %p44 = por %p42, %p43
    %p46 = scmp.ne.s32.totalorder %s29, %s45
    %p47 = scmp.eq.s32.totalorder %s21, 0
    %p48 = por %p46, %p47
    %s50 = sadd.s32 %s49, 1
    %p53 = scmp.eq.s32.totalorder %s15, 3
    %p54 = scmp.ne.s32.totalorder %s49, %s51
    %p55 = scmp.eq.s32.totalorder %s15, 0
    %p56 = por %p54, %p55
    %p57 = scmp.ne.s32.totalorder %s49, %s51
    %p58 = scmp.eq.s32.totalorder %s20, 3
    %p59 = por %p57, %p58
    %p60 = scmp.ne.s32.totalorder %s51, %s52
    %p61 = scmp.eq.s32.totalorder %s20, 0
    %p62 = por %p60, %p61
    %p63 = scmp.ne.s32.totalorder %s51, %s52
    %p64 = scmp.eq.s32.totalorder %s21, 3
    %p65 = por %p63, %p64
    %p67 = scmp.ne.s32.totalorder %s52, %s66
    %p68 = scmp.eq.s32.totalorder %s21, 0
    %p69 = por %p67, %p68
    %s71 = sadd.s32 %s70, 1
    %p74 = scmp.eq.s32.totalorder %s15, 3
    %p75 = scmp.ne.s32.totalorder %s70, %s72
    %p76 = scmp.eq.s32.totalorder %s15, 0
    %p77 = por %p75, %p76
    %p78 = scmp.ne.s32.totalorder %s70, %s72
    %p79 = scmp.eq.s32.totalorder %s20, 3
    %p80 = por %p78, %p79
    %p81 = scmp.ne.s32.totalorder %s72, %s73
    %p82 = scmp.eq.s32.totalorder %s20, 0
    %p83 = por %p81, %p82
    %p84 = scmp.ne.s32.totalorder %s72, %s73
    %p85 = scmp.eq.s32.totalorder %s21, 3
    %p86 = por %p84, %p85
    %p88 = scmp.ne.s32.totalorder %s73, %s87
    %p89 = scmp.eq.s32.totalorder %s21, 0
    %p90 = por %p88, %p89
    %s92 = sadd.s32 %s91, 1
    %p95 = scmp.eq.s32.totalorder %s15, 3
    %p96 = scmp.ne.s32.totalorder %s91, %s93
    %p97 = scmp.eq.s32.totalorder %s15, 0
    %p98 = por %p96, %p97
    %p99 = scmp.ne.s32.totalorder %s91, %s93
    %p100 = scmp.eq.s32.totalorder %s20, 3
    %p101 = por %p99, %p100
    %p102 = scmp.ne.s32.totalorder %s93, %s94
    %p103 = scmp.eq.s32.totalorder %s20, 0
    %p104 = por %p102, %p103
    %p105 = scmp.ne.s32.totalorder %s93, %s94
    %p106 = scmp.eq.s32.totalorder %s21, 3
    %p107 = por %p105, %p106
    %p109 = scmp.ne.s32.totalorder %s94, %s108
    %p110 = scmp.eq.s32.totalorder %s21, 0
    %p111 = por %p109, %p110
    %s112 = ssub.s32 %s15, %s22
    %p113 = scmp.eq.s32.totalorder %s112, 0
    %s115 = sadd.s32 %s114, 1
    %s116 = scalar_select %p113, %s114, %s115
    %p119 = pneg %p113
    %p120 = scmp.eq.s32.totalorder %s15, 3
    %p121 = por %p119, %p120
    %p122 = scmp.ne.s32.totalorder %s114, %s117
    %p123 = scmp.eq.s32.totalorder %s15, 0
    %p124 = por %p122, %p123
    %p125 = scmp.ne.s32.totalorder %s114, %s117
    %p126 = scmp.eq.s32.totalorder %s20, 3
    %p127 = por %p125, %p126
    %p128 = scmp.ne.s32.totalorder %s117, %s118
    %p129 = scmp.eq.s32.totalorder %s20, 0
    %p130 = por %p128, %p129
    %p131 = scmp.ne.s32.totalorder %s117, %s118
    %p132 = scmp.eq.s32.totalorder %s21, 3
    %p133 = por %p131, %p132
    %p135 = scmp.ne.s32.totalorder %s118, %s134
    %p136 = scmp.eq.s32.totalorder %s21, 0
    %p137 = por %p135, %p136
    %s138 = ssub.s32 %s15, %s22
    %p139 = scmp.eq.s32.totalorder %s138, 0
    %s141 = sadd.s32 %s140, 1
    %s142 = scalar_select %p139, %s140, %s141
    %p145 = pneg %p139
    %p146 = scmp.eq.s32.totalorder %s15, 3
    %p147 = por %p145, %p146
    %p148 = scmp.ne.s32.totalorder %s140, %s143
    %p149 = scmp.eq.s32.totalorder %s15, 0
    %p150 = por %p148, %p149
    %p151 = scmp.ne.s32.totalorder %s140, %s143
    %p152 = scmp.eq.s32.totalorder %s20, 3
    %p153 = por %p151, %p152
    %p154 = scmp.ne.s32.totalorder %s143, %s144
    %p155 = scmp.eq.s32.totalorder %s20, 0
    %p156 = por %p154, %p155
    %p157 = scmp.ne.s32.totalorder %s143, %s144
    %p158 = scmp.eq.s32.totalorder %s21, 3
    %p159 = por %p157, %p158
    %p161 = scmp.ne.s32.totalorder %s144, %s160
    %p162 = scmp.eq.s32.totalorder %s21, 0
    %p163 = por %p161, %p162
    %s165 = sadd.s32 %s164, 1
    %p168 = scmp.eq.s32.totalorder %s15, 3
    %p169 = scmp.ne.s32.totalorder %s164, %s166
    %p170 = scmp.eq.s32.totalorder %s15, 0
    %p171 = por %p169, %p170
    %p172 = scmp.ne.s32.totalorder %s164, %s166
    %p173 = scmp.eq.s32.totalorder %s20, 3
    %p174 = por %p172, %p173
    %p175 = scmp.ne.s32.totalorder %s166, %s167
    %p176 = scmp.eq.s32.totalorder %s20, 0
    %p177 = por %p175, %p176
    %p178 = scmp.ne.s32.totalorder %s166, %s167
    %p179 = scmp.eq.s32.totalorder %s21, 3
    %p180 = por %p178, %p179
    %p182 = scmp.ne.s32.totalorder %s167, %s181
    %p183 = scmp.eq.s32.totalorder %s21, 0
    %p184 = por %p182, %p183
    %s186 = sadd.s32 %s185, 1
    %p189 = scmp.eq.s32.totalorder %s15, 3
    %p190 = scmp.ne.s32.totalorder %s185, %s187
    %p191 = scmp.eq.s32.totalorder %s15, 0
    %p192 = por %p190, %p191
    %p193 = scmp.ne.s32.totalorder %s185, %s187
    %p194 = scmp.eq.s32.totalorder %s20, 3
    %p195 = por %p193, %p194
    %p196 = scmp.ne.s32.totalorder %s187, %s188
    %p197 = scmp.eq.s32.totalorder %s20, 0
    %p198 = por %p196, %p197
    %p199 = scmp.ne.s32.totalorder %s187, %s188
    %p200 = scmp.eq.s32.totalorder %s21, 3
    %p201 = por %p199, %p200
    %p203 = scmp.ne.s32.totalorder %s188, %s202
    %p204 = scmp.eq.s32.totalorder %s21, 0
    %p205 = por %p203, %p204
    %s207 = sadd.s32 %s206, 1
    %p210 = scmp.eq.s32.totalorder %s15, 3
    %p211 = scmp.ne.s32.totalorder %s206, %s208
    %p212 = scmp.eq.s32.totalorder %s15, 0
    %p213 = por %p211, %p212
    %p214 = scmp.ne.s32.totalorder %s206, %s208
    %p215 = scmp.eq.s32.totalorder %s20, 3
    %p216 = por %p214, %p215
    %p217 = scmp.ne.s32.totalorder %s208, %s209
    %p218 = scmp.eq.s32.totalorder %s20, 0
    %p219 = por %p217, %p218
    %p220 = scmp.ne.s32.totalorder %s208, %s209
    %p221 = scmp.eq.s32.totalorder %s21, 3
    %p222 = por %p220, %p221
    %p224 = scmp.ne.s32.totalorder %s209, %s223
    %p225 = scmp.eq.s32.totalorder %s21, 0
    %p226 = por %p224, %p225
    %s227 = ssub.s32 %s15, %s22
    %p228 = scmp.eq.s32.totalorder %s227, 0
    %s230 = sadd.s32 %s229, 1
    %s231 = scalar_select %p228, %s229, %s230
    %p234 = pneg %p228
    %p235 = scmp.eq.s32.totalorder %s15, 3
    %p236 = por %p234, %p235
    %p237 = scmp.ne.s32.totalorder %s229, %s232
    %p238 = scmp.eq.s32.totalorder %s15, 0
    %p239 = por %p237, %p238
    %p240 = scmp.ne.s32.totalorder %s229, %s232
    %p241 = scmp.eq.s32.totalorder %s20, 3
    %p242 = por %p240, %p241
    %p243 = scmp.ne.s32.totalorder %s232, %s233
    %p244 = scmp.eq.s32.totalorder %s20, 0
    %p245 = por %p243, %p244
    %p246 = scmp.ne.s32.totalorder %s232, %s233
    %p247 = scmp.eq.s32.totalorder %s21, 3
    %p248 = por %p246, %p247
    %p250 = scmp.ne.s32.totalorder %s233, %s249
    %p251 = scmp.eq.s32.totalorder %s21, 0
    %p252 = por %p250, %p251
    %p253 = scmp.le.s32.totalorder 1, %s15
    %p254 = scmp.lt.s32.totalorder %s15, 5
    %p255 = pnand %p253, %p254
    %p256 = pneg %p255
    // Predicated region
    $region9: #{_lambda_.3} parent=5 // pred_check
      _
    $region10: #{_lambda_.3} parent=5 // pred_check_branch
      %258 = sbr.rel (%p255) target = $region12
    $region11: #{_lambda_.3} parent=5 // pred_region
      %s259 = ssub.s32 %s15, 1
      // Predicated region
      $region13: #{_lambda_.3} parent=11 // pred_check
        %p260 = pneg %p62
      $region14: #{_lambda_.3} parent=11 // pred_check_branch
        %262 = sbr.rel (%p260) target = $region16
      $region15: #{_lambda_.3} parent=11 // pred_region
        _
      $region16: #{_lambda_.3} parent=11 // pred_fallthru
        _
      // Predicated region
      $region17: #{_lambda_.3} parent=11 // pred_check
        %p263 = pneg %p83
      $region18: #{_lambda_.3} parent=11 // pred_check_branch
        %265 = sbr.rel (%p263) target = $region20
      $region19: #{_lambda_.3} parent=11 // pred_region
        _
      $region20: #{_lambda_.3} parent=11 // pred_fallthru
        _
      // Predicated region
      $region21: #{_lambda_.3} parent=11 // pred_check
        %p266 = pneg %p104
      $region22: #{_lambda_.3} parent=11 // pred_check_branch
        %268 = sbr.rel (%p266) target = $region24
      $region23: #{_lambda_.3} parent=11 // pred_region
        _
      $region24: #{_lambda_.3} parent=11 // pred_fallthru
        _
      // Predicated region
      $region25: #{_lambda_.3} parent=11 // pred_check
        %p269 = pneg %p177
      $region26: #{_lambda_.3} parent=11 // pred_check_branch
        %271 = sbr.rel (%p269) target = $region28
      $region27: #{_lambda_.3} parent=11 // pred_region
        _
      $region28: #{_lambda_.3} parent=11 // pred_fallthru
        _
      // Predicated region
      $region29: #{_lambda_.3} parent=11 // pred_check
        %p272 = pneg %p198
      $region30: #{_lambda_.3} parent=11 // pred_check_branch
        %274 = sbr.rel (%p272) target = $region32
      $region31: #{_lambda_.3} parent=11 // pred_region
        _
      $region32: #{_lambda_.3} parent=11 // pred_fallthru
        _
      // Predicated region
      $region33: #{_lambda_.3} parent=11 // pred_check
        %p275 = pneg %p219
      $region34: #{_lambda_.3} parent=11 // pred_check_branch
        %277 = sbr.rel (%p275) target = $region36
      $region35: #{_lambda_.3} parent=11 // pred_region
        _
      $region36: #{_lambda_.3} parent=11 // pred_fallthru
        _
    $region12: #{_lambda_.3} parent=5 // pred_fallthru
      _
    %p278 = scmp.lt.s32.totalorder %s15, 4
    // Predicated region
    $region37: #{_lambda_.3} parent=5 // pred_check
      %p279 = pneg %p278
    $region38: #{_lambda_.3} parent=5 // pred_check_branch
      %281 = sbr.rel (%p279) target = $region40
    $region39: #{_lambda_.3} parent=5 // pred_region
      // Predicated region
      $region41: #{_lambda_.3} parent=39 // pred_check
        %p282 = pneg %p35
      $region42: #{_lambda_.3} parent=39 // pred_check_branch
        %284 = sbr.rel (%p282) target = $region44
      $region43: #{_lambda_.3} parent=39 // pred_region
        %s285 = smul.u32 16, %s15
        %p286 = scmp.lt.s32.totalorder %s285, 63
        %s287 = scalar_select %p286, %s285, 63
        %s288 = smul.addr %s287, 5
        %s289 = smul.addr %s288, 4
        %s290 = scalar_lea.vmem %s0, %s289
        %s291 = smul.u32 16, %s15
      $region44: #{_lambda_.3} parent=39 // pred_fallthru
        _
      // Predicated region
      $region45: #{_lambda_.3} parent=39 // pred_check
        %p292 = pneg %p124
      $region46: #{_lambda_.3} parent=39 // pred_check_branch
        %294 = sbr.rel (%p292) target = $region48
      $region47: #{_lambda_.3} parent=39 // pred_region
        %s295 = smul.u32 16, %s15
        %p296 = scmp.lt.s32.totalorder %s295, 63
        %s297 = scalar_select %p296, %s295, 63
        %s298 = smul.addr %s297, 4
        %s299 = scalar_lea.vmem %s4, %s298
        %s300 = smul.u32 16, %s15
      $region48: #{_lambda_.3} parent=39 // pred_fallthru
        _
      // Predicated region
      $region49: #{_lambda_.3} parent=39 // pred_check
        %p301 = pneg %p150
      $region50: #{_lambda_.3} parent=39 // pred_check_branch
        %303 = sbr.rel (%p301) target = $region52
      $region51: #{_lambda_.3} parent=39 // pred_region
        %s304 = smul.u32 16, %s15
        %p305 = scmp.lt.s32.totalorder %s304, 63
        %s306 = scalar_select %p305, %s304, 63
        %s307 = smul.addr %s306, 4
        %s308 = scalar_lea.vmem %s5, %s307
        %s309 = smul.u32 16, %s15
      $region52: #{_lambda_.3} parent=39 // pred_fallthru
        _
    $region40: #{_lambda_.3} parent=5 // pred_fallthru
      _
    %p310 = scmp.le.s32.totalorder 1, %s15
    %p311 = scmp.lt.s32.totalorder %s15, 5
    %p312 = pnand %p310, %p311
    %p313 = pneg %p312
    // Predicated region
    $region53: #{_lambda_.3} parent=5 // pred_check
      _
    $region54: #{_lambda_.3} parent=5 // pred_check_branch
      %315 = sbr.rel (%p312) target = $region56
    $region55: #{_lambda_.3} parent=5 // pred_region
      %s316 = ssub.s32 %s15, 1
      %s317 = smul.u32 16, %s20
      %p318 = scmp.lt.s32.totalorder %s317, 63
      %s319 = scalar_select %p318, %s317, 63
      %s320 = smul.addr %s319, 5
      %s321 = smul.addr %s320, 4
      %s322 = scalar_lea.vmem %s0, %s321
      %p323 = pneg %p41
      %p324 = pneg %p38
      %p325 = pneg %p62
      %p326 = pneg %p59
      %p327 = pneg %p83
      %p328 = pneg %p80
      %p329 = pneg %p104
      %p330 = pneg %p101
      %s331 = smul.u32 16, %s20
      %p332 = scmp.lt.s32.totalorder %s331, 63
      %s333 = scalar_select %p332, %s331, 63
      %s334 = smul.addr %s333, 4
      %s335 = scalar_lea.vmem %s4, %s334
      %p336 = pneg %p130
      %p337 = pneg %p127
      %s338 = smul.u32 16, %s20
      %p339 = scmp.lt.s32.totalorder %s338, 63
      %s340 = scalar_select %p339, %s338, 63
      %s341 = smul.addr %s340, 4
      %s342 = scalar_lea.vmem %s5, %s341
      %p343 = pneg %p156
      %p344 = pneg %p153
      %p345 = pneg %p177
      %p346 = pneg %p174
      %p347 = pneg %p198
      %p348 = pneg %p195
      %p349 = pneg %p219
      %p350 = pneg %p216
      %p351 = pneg %p245
      %p352 = pneg %p242
      %s353 = smul.u32 16, %s20
      %p354 = scmp.lt.s32.totalorder %s353, 63
      %s355 = scalar_select %p354, %s353, 63
      %s356 = smul.addr %s355, 8
      %s357 = scalar_lea.vmem %s9, %s356
      %s358 = smul.u32 16, %s20
      %p359 = scmp.lt.s32.totalorder %s358, 63
      %s360 = scalar_select %p359, %s358, 63
      %s361 = smul.addr %s360, 5
      %s362 = smul.addr %s361, 4
      %s363 = scalar_lea.vmem %s0, %s362
      %s364 = smul.u32 16, %s20
      %s365 = smul.u32 16, %s20
      %p366 = scmp.lt.s32.totalorder %s365, 63
      %s367 = scalar_select %p366, %s365, 63
      %s368 = smul.addr %s367, 4
      %s369 = scalar_lea.vmem %s4, %s368
      %s370 = smul.u32 16, %s20
      %s371 = smul.u32 16, %s20
      %p372 = scmp.lt.s32.totalorder %s371, 63
      %s373 = scalar_select %p372, %s371, 63
      %s374 = smul.addr %s373, 4
      %s375 = scalar_lea.vmem %s5, %s374
      %s376 = smul.u32 16, %s20
      %s377 = smul.u32 16, %s20
      %p378 = scmp.lt.s32.totalorder %s377, 63
      %s379 = scalar_select %p378, %s377, 63
      %s380 = smul.addr %s379, 8
      %s381 = scalar_lea.vmem %s9, %s380
      %s382 = smul.u32 16, %s20
      %v384 = vld [vmem:[%s363] sm:$0xff]
      %v385 = vld [vmem:[%s363 + $0x8] sm:$0xff]
      %v386 = vld [vmem:[%s363 + $0x10] sm:$0xf]
      %v387 = vld [vmem:[%s363 + $0x14] sm:$0xff]
      %v388 = vld [vmem:[%s363 + $0x1c] sm:$0xff]
      %v389 = vld [vmem:[%s363 + $0x24] sm:$0xf]
      %v390 = vld [vmem:[%s363 + $0x28] sm:$0xff]
      %v391 = vld [vmem:[%s363 + $0x30] sm:$0xff]
      %v392 = vld [vmem:[%s363 + $0x38] sm:$0xf]
      %v393 = vld [vmem:[%s363 + $0x3c] sm:$0xff]
      %v394 = vld [vmem:[%s363 + $0x44] sm:$0xff]
      %v395 = vld [vmem:[%s363 + $0x4c] sm:$0xf]
      %v396 = vld [vmem:[%s363 + $0x50] sm:$0xff]
      %v397 = vld [vmem:[%s363 + $0x58] sm:$0xff]
      %v398 = vld [vmem:[%s363 + $0x60] sm:$0xf]
      %v399 = vld [vmem:[%s363 + $0x64] sm:$0xff]
      %v400 = vld [vmem:[%s363 + $0x6c] sm:$0xff]
      %v401 = vld [vmem:[%s363 + $0x74] sm:$0xf]
      %v402 = vld [vmem:[%s363 + $0x78] sm:$0xff]
      %v403 = vld [vmem:[%s363 + $0x80] sm:$0xff]
      %v404 = vld [vmem:[%s363 + $0x88] sm:$0xf]
      %v405 = vld [vmem:[%s363 + $0x8c] sm:$0xff]
      %v406 = vld [vmem:[%s363 + $0x94] sm:$0xff]
      %v407 = vld [vmem:[%s363 + $0x9c] sm:$0xf]
      %v408 = vld [vmem:[%s363 + $0xa0] sm:$0xff]
      %v409 = vld [vmem:[%s363 + $0xa8] sm:$0xff]
      %v410 = vld [vmem:[%s363 + $0xb0] sm:$0xf]
      %v411 = vld [vmem:[%s363 + $0xb4] sm:$0xff]
      %v412 = vld [vmem:[%s363 + $0xbc] sm:$0xff]
      %v413 = vld [vmem:[%s363 + $0xc4] sm:$0xf]
      %v414 = vld [vmem:[%s363 + $0xc8] sm:$0xff]
      %v415 = vld [vmem:[%s363 + $0xd0] sm:$0xff]
      %v416 = vld [vmem:[%s363 + $0xd8] sm:$0xf]
      %v417 = vld [vmem:[%s363 + $0xdc] sm:$0xff]
      %v418 = vld [vmem:[%s363 + $0xe4] sm:$0xff]
      %v419 = vld [vmem:[%s363 + $0xec] sm:$0xf]
      %v420 = vld [vmem:[%s363 + $0xf0] sm:$0xff]
      %v421 = vld [vmem:[%s363 + $0xf8] sm:$0xff]
      %v422 = vld [vmem:[%s363 + $0x100] sm:$0xf]
      %v423 = vld [vmem:[%s363 + $0x104] sm:$0xff]
      %v424 = vld [vmem:[%s363 + $0x10c] sm:$0xff]
      %v425 = vld [vmem:[%s363 + $0x114] sm:$0xf]
      %v426 = vld [vmem:[%s363 + $0x118] sm:$0xff]
      %v427 = vld [vmem:[%s363 + $0x120] sm:$0xff]
      %v428 = vld [vmem:[%s363 + $0x128] sm:$0xf]
      %v429 = vld [vmem:[%s363 + $0x12c] sm:$0xff]
      %v430 = vld [vmem:[%s363 + $0x134] sm:$0xff]
      %v431 = vld [vmem:[%s363 + $0x13c] sm:$0xf]
      %v432 = vld [vmem:[%s1] sm:$0xf]
      %v433 = vld [vmem:[%s1 + $0x4] sm:$0xf]
      %v434 = vld [vmem:[%s1 + $0x8] sm:$0xf]
      %v435 = vld [vmem:[%s1 + $0xc] sm:$0xf]
      %v436 = vld [vmem:[%s1 + $0x10] sm:$0xf]
      %v437 = vld [vmem:[%s1 + $0x14] sm:$0xf]
      %v438 = vld [vmem:[%s1 + $0x18] sm:$0xf]
      %v439 = vld [vmem:[%s1 + $0x1c] sm:$0xf]
      %v440 = vld [vmem:[%s1 + $0x20] sm:$0xf]
      %v441 = vld [vmem:[%s1 + $0x24] sm:$0xf]
      %v442 = vld [vmem:[%s1 + $0x28] sm:$0xf]
      %v443 = vld [vmem:[%s1 + $0x2c] sm:$0xf]
      %v444 = vld [vmem:[%s1 + $0x30] sm:$0xf]
      %v445 = vld [vmem:[%s1 + $0x34] sm:$0xf]
      %v446 = vld [vmem:[%s1 + $0x38] sm:$0xf]
      %v447 = vld [vmem:[%s1 + $0x3c] sm:$0xf]
      %v448 = vld [vmem:[%s1 + $0x40] sm:$0xf]
      %v449 = vld [vmem:[%s1 + $0x44] sm:$0xf]
      %v450 = vld [vmem:[%s1 + $0x48] sm:$0xf]
      %v451 = vld [vmem:[%s1 + $0x4c] sm:$0xf]
      %v452 = vld [vmem:[%s1 + $0x50] sm:$0xf]
      %v453 = vld [vmem:[%s1 + $0x54] sm:$0xf]
      %v454 = vld [vmem:[%s1 + $0x58] sm:$0xf]
      %v455 = vld [vmem:[%s1 + $0x5c] sm:$0xf]
      %v456 = vld [vmem:[%s1 + $0x60] sm:$0xf]
      %v457 = vld [vmem:[%s1 + $0x64] sm:$0xf]
      %v458 = vld [vmem:[%s1 + $0x68] sm:$0xf]
      %v459 = vld [vmem:[%s1 + $0x6c] sm:$0xf]
      %v460 = vld [vmem:[%s1 + $0x70] sm:$0xf]
      %v461 = vld [vmem:[%s1 + $0x74] sm:$0xf]
      %v462 = vld [vmem:[%s1 + $0x78] sm:$0xf]
      %v463 = vld [vmem:[%s1 + $0x7c] sm:$0xf]
      %v464 = vld [vmem:[%s1 + $0x80] sm:$0xf]
      %v465 = vld [vmem:[%s1 + $0x84] sm:$0xf]
      %v466 = vld [vmem:[%s1 + $0x88] sm:$0xf]
      %v467 = vld [vmem:[%s1 + $0x8c] sm:$0xf]
      %v468 = vld [vmem:[%s1 + $0x90] sm:$0xf]
      %v469 = vld [vmem:[%s1 + $0x94] sm:$0xf]
      %v470 = vld [vmem:[%s1 + $0x98] sm:$0xf]
      %v471 = vld [vmem:[%s1 + $0x9c] sm:$0xf]
      %v472 = vld [vmem:[%s1 + $0xa0] sm:$0xf]
      %v473 = vld [vmem:[%s1 + $0xa4] sm:$0xf]
      %v474 = vld [vmem:[%s1 + $0xa8] sm:$0xf]
      %v475 = vld [vmem:[%s1 + $0xac] sm:$0xf]
      %v476 = vld [vmem:[%s1 + $0xb0] sm:$0xf]
      %v477 = vld [vmem:[%s1 + $0xb4] sm:$0xf]
      %v478 = vld [vmem:[%s1 + $0xb8] sm:$0xf]
      %v479 = vld [vmem:[%s1 + $0xbc] sm:$0xf]
      %v480 = vld [vmem:[%s1 + $0xc0] sm:$0xf]
      %v481 = vld [vmem:[%s1 + $0xc4] sm:$0xf]
      %v482 = vld [vmem:[%s1 + $0xc8] sm:$0xf]
      %v483 = vld [vmem:[%s1 + $0xcc] sm:$0xf]
      %v484 = vld [vmem:[%s1 + $0xd0] sm:$0xf]
      %v485 = vld [vmem:[%s1 + $0xd4] sm:$0xf]
      %v486 = vld [vmem:[%s1 + $0xd8] sm:$0xf]
      %v487 = vld [vmem:[%s1 + $0xdc] sm:$0xf]
      %v488 = vld [vmem:[%s1 + $0xe0] sm:$0xf]
      %v489 = vld [vmem:[%s1 + $0xe4] sm:$0xf]
      %v490 = vld [vmem:[%s1 + $0xe8] sm:$0xf]
      %v491 = vld [vmem:[%s1 + $0xec] sm:$0xf]
      %v492 = vld [vmem:[%s1 + $0xf0] sm:$0xf]
      %v493 = vld [vmem:[%s1 + $0xf4] sm:$0xf]
      %v494 = vld [vmem:[%s1 + $0xf8] sm:$0xf]
      %v495 = vld [vmem:[%s1 + $0xfc] sm:$0xf]
      %v496 = vld [vmem:[%s1 + $0x100] sm:$0xf]
      %v497 = vld [vmem:[%s1 + $0x104] sm:$0xf]
      %v498 = vld [vmem:[%s1 + $0x108] sm:$0xf]
      %v499 = vld [vmem:[%s1 + $0x10c] sm:$0xf]
      %v500 = vld [vmem:[%s1 + $0x110] sm:$0xf]
      %v501 = vld [vmem:[%s1 + $0x114] sm:$0xf]
      %v502 = vld [vmem:[%s1 + $0x118] sm:$0xf]
      %v503 = vld [vmem:[%s1 + $0x11c] sm:$0xf]
      %v504 = vld [vmem:[%s1 + $0x120] sm:$0xf]
      %v505 = vld [vmem:[%s1 + $0x124] sm:$0xf]
      %v506 = vld [vmem:[%s1 + $0x128] sm:$0xf]
      %v507 = vld [vmem:[%s1 + $0x12c] sm:$0xf]
      %v508 = vld [vmem:[%s1 + $0x130] sm:$0xf]
      %v509 = vld [vmem:[%s1 + $0x134] sm:$0xf]
      %v510 = vld [vmem:[%s1 + $0x138] sm:$0xf]
      %v511 = vld [vmem:[%s1 + $0x13c] sm:$0xf]
      %v560 = vunpack.c.l.b16 %v384
      %v561 = vunpack.c.h.b16 %v384
      %v562 = vunpack.c.l.b16 %v385
      %v563 = vunpack.c.h.b16 %v385
      %v564 = vunpack.c.l.b16 %v386
      %v565 = vunpack.c.l.b16 %v387
      %v566 = vunpack.c.h.b16 %v387
      %v567 = vunpack.c.l.b16 %v388
      %v568 = vunpack.c.h.b16 %v388
      %v569 = vunpack.c.l.b16 %v389
      %v570 = vunpack.c.l.b16 %v390
      %v571 = vunpack.c.h.b16 %v390
      %v572 = vunpack.c.l.b16 %v391
      %v573 = vunpack.c.h.b16 %v391
      %v574 = vunpack.c.l.b16 %v392
      %v575 = vunpack.c.l.b16 %v393
      %v576 = vunpack.c.h.b16 %v393
      %v577 = vunpack.c.l.b16 %v394
      %v578 = vunpack.c.h.b16 %v394
      %v579 = vunpack.c.l.b16 %v395
      %v580 = vunpack.c.l.b16 %v396
      %v581 = vunpack.c.h.b16 %v396
      %v582 = vunpack.c.l.b16 %v397
      %v583 = vunpack.c.h.b16 %v397
      %v584 = vunpack.c.l.b16 %v398
      %v585 = vunpack.c.l.b16 %v399
      %v586 = vunpack.c.h.b16 %v399
      %v587 = vunpack.c.l.b16 %v400
      %v588 = vunpack.c.h.b16 %v400
      %v589 = vunpack.c.l.b16 %v401
      %v590 = vunpack.c.l.b16 %v402
      %v591 = vunpack.c.h.b16 %v402
      %v592 = vunpack.c.l.b16 %v403
      %v593 = vunpack.c.h.b16 %v403
      %v594 = vunpack.c.l.b16 %v404
      %v595 = vunpack.c.l.b16 %v405
      %v596 = vunpack.c.h.b16 %v405
      %v597 = vunpack.c.l.b16 %v406
      %v598 = vunpack.c.h.b16 %v406
      %v599 = vunpack.c.l.b16 %v407
      %v600 = vunpack.c.l.b16 %v408
      %v601 = vunpack.c.h.b16 %v408
      %v602 = vunpack.c.l.b16 %v409
      %v603 = vunpack.c.h.b16 %v409
      %v604 = vunpack.c.l.b16 %v410
      %v605 = vunpack.c.l.b16 %v411
      %v606 = vunpack.c.h.b16 %v411
      %v607 = vunpack.c.l.b16 %v412
      %v608 = vunpack.c.h.b16 %v412
      %v609 = vunpack.c.l.b16 %v413
      %v610 = vunpack.c.l.b16 %v414
      %v611 = vunpack.c.h.b16 %v414
      %v612 = vunpack.c.l.b16 %v415
      %v613 = vunpack.c.h.b16 %v415
      %v614 = vunpack.c.l.b16 %v416
      %v615 = vunpack.c.l.b16 %v417
      %v616 = vunpack.c.h.b16 %v417
      %v617 = vunpack.c.l.b16 %v418
      %v618 = vunpack.c.h.b16 %v418
      %v619 = vunpack.c.l.b16 %v419
      %v620 = vunpack.c.l.b16 %v420
      %v621 = vunpack.c.h.b16 %v420
      %v622 = vunpack.c.l.b16 %v421
      %v623 = vunpack.c.h.b16 %v421
      %v624 = vunpack.c.l.b16 %v422
      %v625 = vunpack.c.l.b16 %v423
      %v626 = vunpack.c.h.b16 %v423
      %v627 = vunpack.c.l.b16 %v424
      %v628 = vunpack.c.h.b16 %v424
      %v629 = vunpack.c.l.b16 %v425
      %v630 = vunpack.c.l.b16 %v426
      %v631 = vunpack.c.h.b16 %v426
      %v632 = vunpack.c.l.b16 %v427
      %v633 = vunpack.c.h.b16 %v427
      %v634 = vunpack.c.l.b16 %v428
      %v635 = vunpack.c.l.b16 %v429
      %v636 = vunpack.c.h.b16 %v429
      %v637 = vunpack.c.l.b16 %v430
      %v638 = vunpack.c.h.b16 %v430
      %v639 = vunpack.c.l.b16 %v431
      %v640 = vpack.c.b16 %v565, %v560
      %v641 = vpack.c.b16 %v566, %v561
      %v642 = vpack.c.b16 %v567, %v562
      %v643 = vpack.c.b16 %v568, %v563
      %v644 = vpack.c.b16 %v569, %v564
      %v645 = vpack.c.b16 %v575, %v570
      %v646 = vpack.c.b16 %v576, %v571
      %v647 = vpack.c.b16 %v577, %v572
      %v648 = vpack.c.b16 %v578, %v573
      %v649 = vpack.c.b16 %v579, %v574
      %v650 = vpack.c.b16 %v585, %v580
      %v651 = vpack.c.b16 %v586, %v581
      %v652 = vpack.c.b16 %v587, %v582
      %v653 = vpack.c.b16 %v588, %v583
      %v654 = vpack.c.b16 %v589, %v584
      %v655 = vpack.c.b16 %v595, %v590
      %v656 = vpack.c.b16 %v596, %v591
      %v657 = vpack.c.b16 %v597, %v592
      %v658 = vpack.c.b16 %v598, %v593
      %v659 = vpack.c.b16 %v599, %v594
      %v660 = vpack.c.b16 %v605, %v600
      %v661 = vpack.c.b16 %v606, %v601
      %v662 = vpack.c.b16 %v607, %v602
      %v663 = vpack.c.b16 %v608, %v603
      %v664 = vpack.c.b16 %v609, %v604
      %v665 = vpack.c.b16 %v615, %v610
      %v666 = vpack.c.b16 %v616, %v611
      %v667 = vpack.c.b16 %v617, %v612
      %v668 = vpack.c.b16 %v618, %v613
      %v669 = vpack.c.b16 %v619, %v614
      %v670 = vpack.c.b16 %v625, %v620
      %v671 = vpack.c.b16 %v626, %v621
      %v672 = vpack.c.b16 %v627, %v622
      %v673 = vpack.c.b16 %v628, %v623
      %v674 = vpack.c.b16 %v629, %v624
      %v675 = vpack.c.b16 %v635, %v630
      %v676 = vpack.c.b16 %v636, %v631
      %v677 = vpack.c.b16 %v637, %v632
      %v678 = vpack.c.b16 %v638, %v633
      %v679 = vpack.c.b16 %v639, %v634
      %v800 = vunpack.c.l.b16 %v432
      %v801 = vunpack.c.l.b16 %v433
      %v802 = vunpack.c.l.b16 %v434
      %v803 = vunpack.c.l.b16 %v435
      %v804 = vunpack.c.l.b16 %v436
      %v805 = vunpack.c.l.b16 %v437
      %v806 = vunpack.c.l.b16 %v438
      %v807 = vunpack.c.l.b16 %v439
      %v808 = vunpack.c.l.b16 %v440
      %v809 = vunpack.c.l.b16 %v441
      %v810 = vunpack.c.l.b16 %v442
      %v811 = vunpack.c.l.b16 %v443
      %v812 = vunpack.c.l.b16 %v444
      %v813 = vunpack.c.l.b16 %v445
      %v814 = vunpack.c.l.b16 %v446
      %v815 = vunpack.c.l.b16 %v447
      %v816 = vunpack.c.l.b16 %v448
      %v817 = vunpack.c.l.b16 %v449
      %v818 = vunpack.c.l.b16 %v450
      %v819 = vunpack.c.l.b16 %v451
      %v820 = vunpack.c.l.b16 %v452
      %v821 = vunpack.c.l.b16 %v453
      %v822 = vunpack.c.l.b16 %v454
      %v823 = vunpack.c.l.b16 %v455
      %v824 = vunpack.c.l.b16 %v456
      %v825 = vunpack.c.l.b16 %v457
      %v826 = vunpack.c.l.b16 %v458
      %v827 = vunpack.c.l.b16 %v459
      %v828 = vunpack.c.l.b16 %v460
      %v829 = vunpack.c.l.b16 %v461
      %v830 = vunpack.c.l.b16 %v462
      %v831 = vunpack.c.l.b16 %v463
      %v832 = vunpack.c.l.b16 %v464
      %v833 = vunpack.c.l.b16 %v465
      %v834 = vunpack.c.l.b16 %v466
      %v835 = vunpack.c.l.b16 %v467
      %v836 = vunpack.c.l.b16 %v468
      %v837 = vunpack.c.l.b16 %v469
      %v838 = vunpack.c.l.b16 %v470
      %v839 = vunpack.c.l.b16 %v471
      %v840 = vunpack.c.l.b16 %v472
      %v841 = vunpack.c.l.b16 %v473
      %v842 = vunpack.c.l.b16 %v474
      %v843 = vunpack.c.l.b16 %v475
      %v844 = vunpack.c.l.b16 %v476
      %v845 = vunpack.c.l.b16 %v477
      %v846 = vunpack.c.l.b16 %v478
      %v847 = vunpack.c.l.b16 %v479
      %v848 = vunpack.c.l.b16 %v480
      %v849 = vunpack.c.l.b16 %v481
      %v850 = vunpack.c.l.b16 %v482
      %v851 = vunpack.c.l.b16 %v483
      %v852 = vunpack.c.l.b16 %v484
      %v853 = vunpack.c.l.b16 %v485
      %v854 = vunpack.c.l.b16 %v486
      %v855 = vunpack.c.l.b16 %v487
      %v856 = vunpack.c.l.b16 %v488
      %v857 = vunpack.c.l.b16 %v489
      %v858 = vunpack.c.l.b16 %v490
      %v859 = vunpack.c.l.b16 %v491
      %v860 = vunpack.c.l.b16 %v492
      %v861 = vunpack.c.l.b16 %v493
      %v862 = vunpack.c.l.b16 %v494
      %v863 = vunpack.c.l.b16 %v495
      %v864 = vunpack.c.l.b16 %v496
      %v865 = vunpack.c.l.b16 %v497
      %v866 = vunpack.c.l.b16 %v498
      %v867 = vunpack.c.l.b16 %v499
      %v868 = vunpack.c.l.b16 %v500
      %v869 = vunpack.c.l.b16 %v501
      %v870 = vunpack.c.l.b16 %v502
      %v871 = vunpack.c.l.b16 %v503
      %v872 = vunpack.c.l.b16 %v504
      %v873 = vunpack.c.l.b16 %v505
      %v874 = vunpack.c.l.b16 %v506
      %v875 = vunpack.c.l.b16 %v507
      %v876 = vunpack.c.l.b16 %v508
      %v877 = vunpack.c.l.b16 %v509
      %v878 = vunpack.c.l.b16 %v510
      %v879 = vunpack.c.l.b16 %v511
      %v880 = vpack.c.b16 %v801, %v800
      %v881 = vpack.c.b16 %v803, %v802
      %v882 = vpack.c.b16 %v805, %v804
      %v883 = vpack.c.b16 %v807, %v806
      %v884 = vpack.c.b16 %v809, %v808
      %v885 = vpack.c.b16 %v811, %v810
      %v886 = vpack.c.b16 %v813, %v812
      %v887 = vpack.c.b16 %v815, %v814
      %v888 = vpack.c.b16 %v817, %v816
      %v889 = vpack.c.b16 %v819, %v818
      %v890 = vpack.c.b16 %v821, %v820
      %v891 = vpack.c.b16 %v823, %v822
      %v892 = vpack.c.b16 %v825, %v824
      %v893 = vpack.c.b16 %v827, %v826
      %v894 = vpack.c.b16 %v829, %v828
      %v895 = vpack.c.b16 %v831, %v830
      %v896 = vpack.c.b16 %v833, %v832
      %v897 = vpack.c.b16 %v835, %v834
      %v898 = vpack.c.b16 %v837, %v836
      %v899 = vpack.c.b16 %v839, %v838
      %v900 = vpack.c.b16 %v841, %v840
      %v901 = vpack.c.b16 %v843, %v842
      %v902 = vpack.c.b16 %v845, %v844
      %v903 = vpack.c.b16 %v847, %v846
      %v904 = vpack.c.b16 %v849, %v848
      %v905 = vpack.c.b16 %v851, %v850
      %v906 = vpack.c.b16 %v853, %v852
      %v907 = vpack.c.b16 %v855, %v854
      %v908 = vpack.c.b16 %v857, %v856
      %v909 = vpack.c.b16 %v859, %v858
      %v910 = vpack.c.b16 %v861, %v860
      %v911 = vpack.c.b16 %v863, %v862
      %v912 = vpack.c.b16 %v865, %v864
      %v913 = vpack.c.b16 %v867, %v866
      %v914 = vpack.c.b16 %v869, %v868
      %v915 = vpack.c.b16 %v871, %v870
      %v916 = vpack.c.b16 %v873, %v872
      %v917 = vpack.c.b16 %v875, %v874
      %v918 = vpack.c.b16 %v877, %v876
      %v919 = vpack.c.b16 %v879, %v878
      %960 = vmatprep.subr.bf16.mxu0 0
      %961 = vmatpush1.bf16.msra.mxu0 %v887
      %962 = vmatprep.subr.bf16.mxu0 0
      %963 = vmatpush1.bf16.msra.mxu0 %v886
      %964 = vmatprep.subr.bf16.mxu0 0
      %965 = vmatpush1.bf16.msra.mxu0 %v885
      %966 = vmatprep.subr.bf16.mxu0 0
      %967 = vmatpush1.bf16.msra.mxu0 %v884
      %968 = vmatprep.subr.bf16.mxu0 0
      %969 = vmatpush1.bf16.msra.mxu0 %v883
      %970 = vmatprep.subr.bf16.mxu0 0
      %971 = vmatpush1.bf16.msra.mxu0 %v882
      %972 = vmatprep.subr.bf16.mxu0 0
      %973 = vmatpush1.bf16.msra.mxu0 %v881
      %974 = vmatprep.subr.bf16.mxu0 0
      %975 = vmatpush1.bf16.msra.mxu0 %v880
      %976 = vmatprep.subr.bf16.mxu0 0
      %977 = vmatpush2.bf16.msra.mxu0 %v895
      %978 = vmatprep.subr.bf16.mxu0 0
      %979 = vmatpush2.bf16.msra.mxu0 %v894
      %980 = vmatprep.subr.bf16.mxu0 0
      %981 = vmatpush2.bf16.msra.mxu0 %v893
      %982 = vmatprep.subr.bf16.mxu0 0
      %983 = vmatpush2.bf16.msra.mxu0 %v892
      %984 = vmatprep.subr.bf16.mxu0 0
      %985 = vmatpush2.bf16.msra.mxu0 %v891
      %986 = vmatprep.subr.bf16.mxu0 0
      %987 = vmatpush2.bf16.msra.mxu0 %v890
      %988 = vmatprep.subr.bf16.mxu0 0
      %989 = vmatpush2.bf16.msra.mxu0 %v889
      %990 = vmatprep.subr.bf16.mxu0 0
      %991 = vmatpush2.bf16.msra.mxu0 %v888
      %992 = vmatprep.mubr.bf16.mxu0 %v641
      %993 = vmatmul.mubr.bf16.gmra.mxu0 %v640
      %v994 = vpop.f32.mrf.mxu0
      %v995 = vadd.f32 0.0, %v994
      %v996 = vpop.f32.mrf.mxu0
      %v997 = vpop.f32.mrf.mxu0
      %v998 = vadd.f32 0.0, %v997
      %v999 = vpop.f32.mrf.mxu0
      %1000 = vmatprep.mubr.bf16.mxu0 %v646
      %1001 = vmatmul.mubr.bf16.gmra.mxu0 %v645
      %v1002 = vpop.f32.mrf.mxu0
      %v1003 = vadd.f32 0.0, %v1002
      %v1004 = vpop.f32.mrf.mxu0
      %v1005 = vpop.f32.mrf.mxu0
      %v1006 = vadd.f32 0.0, %v1005
      %v1007 = vpop.f32.mrf.mxu0
      %1008 = vmatprep.mubr.bf16.mxu0 %v651
      %1009 = vmatmul.mubr.bf16.gmra.mxu0 %v650
      %v1010 = vpop.f32.mrf.mxu0
      %v1011 = vadd.f32 0.0, %v1010
      %v1012 = vpop.f32.mrf.mxu0
      %v1013 = vpop.f32.mrf.mxu0
      %v1014 = vadd.f32 0.0, %v1013
      %v1015 = vpop.f32.mrf.mxu0
      %1016 = vmatprep.mubr.bf16.mxu0 %v656
      %1017 = vmatmul.mubr.bf16.gmra.mxu0 %v655
      %v1018 = vpop.f32.mrf.mxu0
      %v1019 = vadd.f32 0.0, %v1018
      %v1020 = vpop.f32.mrf.mxu0
      %v1021 = vpop.f32.mrf.mxu0
      %v1022 = vadd.f32 0.0, %v1021
      %v1023 = vpop.f32.mrf.mxu0
      %1024 = vmatprep.mubr.bf16.mxu0 %v661
      %1025 = vmatmul.mubr.bf16.gmra.mxu0 %v660
      %v1026 = vpop.f32.mrf.mxu0
      %v1027 = vadd.f32 0.0, %v1026
      %v1028 = vpop.f32.mrf.mxu0
      %v1029 = vpop.f32.mrf.mxu0
      %v1030 = vadd.f32 0.0, %v1029
      %v1031 = vpop.f32.mrf.mxu0
      %1032 = vmatprep.mubr.bf16.mxu0 %v666
      %1033 = vmatmul.mubr.bf16.gmra.mxu0 %v665
      %v1034 = vpop.f32.mrf.mxu0
      %v1035 = vadd.f32 0.0, %v1034
      %v1036 = vpop.f32.mrf.mxu0
      %v1037 = vpop.f32.mrf.mxu0
      %v1038 = vadd.f32 0.0, %v1037
      %v1039 = vpop.f32.mrf.mxu0
      %1040 = vmatprep.mubr.bf16.mxu0 %v671
      %1041 = vmatmul.mubr.bf16.gmra.mxu0 %v670
      %v1042 = vpop.f32.mrf.mxu0
      %v1043 = vadd.f32 0.0, %v1042
      %v1044 = vpop.f32.mrf.mxu0
      %v1045 = vpop.f32.mrf.mxu0
      %v1046 = vadd.f32 0.0, %v1045
      %v1047 = vpop.f32.mrf.mxu0
      %1048 = vmatprep.mubr.bf16.mxu0 %v676
      %1049 = vmatmul.mubr.bf16.gmra.mxu0 %v675
      %v1050 = vpop.f32.mrf.mxu0
      %v1051 = vadd.f32 0.0, %v1050
      %v1052 = vpop.f32.mrf.mxu0
      %v1053 = vpop.f32.mrf.mxu0
      %v1054 = vadd.f32 0.0, %v1053
      %v1055 = vpop.f32.mrf.mxu0
      %1056 = vdwg.mxu0
      %1057 = vmatprep.subr.bf16.mxu0 0
      %1058 = vmatpush1.bf16.msra.mxu0 %v903
      %1059 = vmatprep.subr.bf16.mxu0 0
      %1060 = vmatpush1.bf16.msra.mxu0 %v902
      %1061 = vmatprep.subr.bf16.mxu0 0
      %1062 = vmatpush1.bf16.msra.mxu0 %v901
      %1063 = vmatprep.subr.bf16.mxu0 0
      %1064 = vmatpush1.bf16.msra.mxu0 %v900
      %1065 = vmatprep.subr.bf16.mxu0 0
      %1066 = vmatpush1.bf16.msra.mxu0 %v899
      %1067 = vmatprep.subr.bf16.mxu0 0
      %1068 = vmatpush1.bf16.msra.mxu0 %v898
      %1069 = vmatprep.subr.bf16.mxu0 0
      %1070 = vmatpush1.bf16.msra.mxu0 %v897
      %1071 = vmatprep.subr.bf16.mxu0 0
      %1072 = vmatpush1.bf16.msra.mxu0 %v896
      %1073 = vmatprep.subr.bf16.mxu0 0
      %1074 = vmatpush2.bf16.msra.mxu0 %v911
      %1075 = vmatprep.subr.bf16.mxu0 0
      %1076 = vmatpush2.bf16.msra.mxu0 %v910
      %1077 = vmatprep.subr.bf16.mxu0 0
      %1078 = vmatpush2.bf16.msra.mxu0 %v909
      %1079 = vmatprep.subr.bf16.mxu0 0
      %1080 = vmatpush2.bf16.msra.mxu0 %v908
      %1081 = vmatprep.subr.bf16.mxu0 0
      %1082 = vmatpush2.bf16.msra.mxu0 %v907
      %1083 = vmatprep.subr.bf16.mxu0 0
      %1084 = vmatpush2.bf16.msra.mxu0 %v906
      %1085 = vmatprep.subr.bf16.mxu0 0
      %1086 = vmatpush2.bf16.msra.mxu0 %v905
      %1087 = vmatprep.subr.bf16.mxu0 0
      %1088 = vmatpush2.bf16.msra.mxu0 %v904
      %1089 = vmatprep.mubr.bf16.mxu0 %v643
      %1090 = vmatmul.mubr.bf16.gmra.mxu0 %v642
      %v1091 = vpop.f32.mrf.mxu0
      %v1092 = vadd.f32 %v995, %v1091
      %v1093 = vpop.f32.mrf.mxu0
      %v1094 = vpop.f32.mrf.mxu0
      %v1095 = vadd.f32 %v998, %v1094
      %v1096 = vpop.f32.mrf.mxu0
      %1097 = vmatprep.mubr.bf16.mxu0 %v648
      %1098 = vmatmul.mubr.bf16.gmra.mxu0 %v647
      %v1099 = vpop.f32.mrf.mxu0
      %v1100 = vadd.f32 %v1003, %v1099
      %v1101 = vpop.f32.mrf.mxu0
      %v1102 = vpop.f32.mrf.mxu0
      %v1103 = vadd.f32 %v1006, %v1102
      %v1104 = vpop.f32.mrf.mxu0
      %1105 = vmatprep.mubr.bf16.mxu0 %v653
      %1106 = vmatmul.mubr.bf16.gmra.mxu0 %v652
      %v1107 = vpop.f32.mrf.mxu0
      %v1108 = vadd.f32 %v1011, %v1107
      %v1109 = vpop.f32.mrf.mxu0
      %v1110 = vpop.f32.mrf.mxu0
      %v1111 = vadd.f32 %v1014, %v1110
      %v1112 = vpop.f32.mrf.mxu0
      %1113 = vmatprep.mubr.bf16.mxu0 %v658
      %1114 = vmatmul.mubr.bf16.gmra.mxu0 %v657
      %v1115 = vpop.f32.mrf.mxu0
      %v1116 = vadd.f32 %v1019, %v1115
      %v1117 = vpop.f32.mrf.mxu0
      %v1118 = vpop.f32.mrf.mxu0
      %v1119 = vadd.f32 %v1022, %v1118
      %v1120 = vpop.f32.mrf.mxu0
      %1121 = vmatprep.mubr.bf16.mxu0 %v663
      %1122 = vmatmul.mubr.bf16.gmra.mxu0 %v662
      %v1123 = vpop.f32.mrf.mxu0
      %v1124 = vadd.f32 %v1027, %v1123
      %v1125 = vpop.f32.mrf.mxu0
      %v1126 = vpop.f32.mrf.mxu0
      %v1127 = vadd.f32 %v1030, %v1126
      %v1128 = vpop.f32.mrf.mxu0
      %1129 = vmatprep.mubr.bf16.mxu0 %v668
      %1130 = vmatmul.mubr.bf16.gmra.mxu0 %v667
      %v1131 = vpop.f32.mrf.mxu0
      %v1132 = vadd.f32 %v1035, %v1131
      %v1133 = vpop.f32.mrf.mxu0
      %v1134 = vpop.f32.mrf.mxu0
      %v1135 = vadd.f32 %v1038, %v1134
      %v1136 = vpop.f32.mrf.mxu0
      %1137 = vmatprep.mubr.bf16.mxu0 %v673
      %1138 = vmatmul.mubr.bf16.gmra.mxu0 %v672
      %v1139 = vpop.f32.mrf.mxu0
      %v1140 = vadd.f32 %v1043, %v1139
      %v1141 = vpop.f32.mrf.mxu0
      %v1142 = vpop.f32.mrf.mxu0
      %v1143 = vadd.f32 %v1046, %v1142
      %v1144 = vpop.f32.mrf.mxu0
      %1145 = vmatprep.mubr.bf16.mxu0 %v678
      %1146 = vmatmul.mubr.bf16.gmra.mxu0 %v677
      %v1147 = vpop.f32.mrf.mxu0
      %v1148 = vadd.f32 %v1051, %v1147
      %v1149 = vpop.f32.mrf.mxu0
      %v1150 = vpop.f32.mrf.mxu0
      %v1151 = vadd.f32 %v1054, %v1150
      %v1152 = vpop.f32.mrf.mxu0
      %1153 = vdwg.mxu0
      %1154 = vmatprep.subr.bf16.mxu0 0
      %1155 = vmatpush1.bf16.msra.mxu0 %v919
      %1156 = vmatprep.subr.bf16.mxu0 0
      %1157 = vmatpush1.bf16.msra.mxu0 %v918
      %1158 = vmatprep.subr.bf16.mxu0 0
      %1159 = vmatpush1.bf16.msra.mxu0 %v917
      %1160 = vmatprep.subr.bf16.mxu0 0
      %1161 = vmatpush1.bf16.msra.mxu0 %v916
      %1162 = vmatprep.subr.bf16.mxu0 0
      %1163 = vmatpush1.bf16.msra.mxu0 %v915
      %1164 = vmatprep.subr.bf16.mxu0 0
      %1165 = vmatpush1.bf16.msra.mxu0 %v914
      %1166 = vmatprep.subr.bf16.mxu0 0
      %1167 = vmatpush1.bf16.msra.mxu0 %v913
      %1168 = vmatprep.subr.bf16.mxu0 0
      %1169 = vmatpush1.bf16.msra.mxu0 %v912
      %1170 = vmatprep.subr.bf16.mxu0 0
      %1171 = vmatpush2.bf16.msra.mxu0 0
      %1172 = vmatprep.subr.bf16.mxu0 0
      %1173 = vmatpush2.bf16.msra.mxu0 0
      %1174 = vmatprep.subr.bf16.mxu0 0
      %1175 = vmatpush2.bf16.msra.mxu0 0
      %1176 = vmatprep.subr.bf16.mxu0 0
      %1177 = vmatpush2.bf16.msra.mxu0 0
      %1178 = vmatprep.subr.bf16.mxu0 0
      %1179 = vmatpush2.bf16.msra.mxu0 0
      %1180 = vmatprep.subr.bf16.mxu0 0
      %1181 = vmatpush2.bf16.msra.mxu0 0
      %1182 = vmatprep.subr.bf16.mxu0 0
      %1183 = vmatpush2.bf16.msra.mxu0 0
      %1184 = vmatprep.subr.bf16.mxu0 0
      %1185 = vmatpush2.bf16.msra.mxu0 0
      %1186 = vmatprep.mubr.bf16.mxu0 0
      %1187 = vmatmul.mubr.bf16.gmra.mxu0 %v644
      %v1188 = vpop.f32.mrf.mxu0
      %v1189 = vadd.f32 %v1092, %v1188
      %v1190 = vpop.f32.mrf.mxu0
      %v1191 = vpop.f32.mrf.mxu0
      %v1192 = vadd.f32 %v1095, %v1191
      %v1193 = vpop.f32.mrf.mxu0
      %1194 = vmatprep.mubr.bf16.mxu0 0
      %1195 = vmatmul.mubr.bf16.gmra.mxu0 %v649
      %v1196 = vpop.f32.mrf.mxu0
      %v1197 = vadd.f32 %v1100, %v1196
      %v1198 = vpop.f32.mrf.mxu0
      %v1199 = vpop.f32.mrf.mxu0
      %v1200 = vadd.f32 %v1103, %v1199
      %v1201 = vpop.f32.mrf.mxu0
      %1202 = vmatprep.mubr.bf16.mxu0 0
      %1203 = vmatmul.mubr.bf16.gmra.mxu0 %v654
      %v1204 = vpop.f32.mrf.mxu0
      %v1205 = vadd.f32 %v1108, %v1204
      %v1206 = vpop.f32.mrf.mxu0
      %v1207 = vpop.f32.mrf.mxu0
      %v1208 = vadd.f32 %v1111, %v1207
      %v1209 = vpop.f32.mrf.mxu0
      %1210 = vmatprep.mubr.bf16.mxu0 0
      %1211 = vmatmul.mubr.bf16.gmra.mxu0 %v659
      %v1212 = vpop.f32.mrf.mxu0
      %v1213 = vadd.f32 %v1116, %v1212
      %v1214 = vpop.f32.mrf.mxu0
      %v1215 = vpop.f32.mrf.mxu0
      %v1216 = vadd.f32 %v1119, %v1215
      %v1217 = vpop.f32.mrf.mxu0
      %1218 = vmatprep.mubr.bf16.mxu0 0
      %1219 = vmatmul.mubr.bf16.gmra.mxu0 %v664
      %v1220 = vpop.f32.mrf.mxu0
      %v1221 = vadd.f32 %v1124, %v1220
      %v1222 = vpop.f32.mrf.mxu0
      %v1223 = vpop.f32.mrf.mxu0
      %v1224 = vadd.f32 %v1127, %v1223
      %v1225 = vpop.f32.mrf.mxu0
      %1226 = vmatprep.mubr.bf16.mxu0 0
      %1227 = vmatmul.mubr.bf16.gmra.mxu0 %v669
      %v1228 = vpop.f32.mrf.mxu0
      %v1229 = vadd.f32 %v1132, %v1228
      %v1230 = vpop.f32.mrf.mxu0
      %v1231 = vpop.f32.mrf.mxu0
      %v1232 = vadd.f32 %v1135, %v1231
      %v1233 = vpop.f32.mrf.mxu0
      %1234 = vmatprep.mubr.bf16.mxu0 0
      %1235 = vmatmul.mubr.bf16.gmra.mxu0 %v674
      %v1236 = vpop.f32.mrf.mxu0
      %v1237 = vadd.f32 %v1140, %v1236
      %v1238 = vpop.f32.mrf.mxu0
      %v1239 = vpop.f32.mrf.mxu0
      %v1240 = vadd.f32 %v1143, %v1239
      %v1241 = vpop.f32.mrf.mxu0
      %1242 = vmatprep.mubr.bf16.mxu0 0
      %1243 = vmatmul.mubr.bf16.gmra.mxu0 %v679
      %v1244 = vpop.f32.mrf.mxu0
      %v1245 = vadd.f32 %v1148, %v1244
      %v1246 = vpop.f32.mrf.mxu0
      %v1247 = vpop.f32.mrf.mxu0
      %v1248 = vadd.f32 %v1151, %v1247
      %v1249 = vpop.f32.mrf.mxu0
      %1250 = vdwg.mxu0
      %v1251 = vld [vmem:[%s2] sm:$0x1]
      %v1253 = vlaneseq
      %v1254 = vshrl.u32 %v1253, 7
      %v1255 = vsub.s32 0, %v1254
      %v1256 = vrot.slane %v1251, %v1255
      %v1258 = vmul.f32 %v1189, %v1256
      %v1259 = vmul.f32 %v1192, %v1256
      %v1260 = vmul.f32 %v1197, %v1256
      %v1261 = vmul.f32 %v1200, %v1256
      %v1262 = vmul.f32 %v1205, %v1256
      %v1263 = vmul.f32 %v1208, %v1256
      %v1264 = vmul.f32 %v1213, %v1256
      %v1265 = vmul.f32 %v1216, %v1256
      %v1266 = vmul.f32 %v1221, %v1256
      %v1267 = vmul.f32 %v1224, %v1256
      %v1268 = vmul.f32 %v1229, %v1256
      %v1269 = vmul.f32 %v1232, %v1256
      %v1270 = vmul.f32 %v1237, %v1256
      %v1271 = vmul.f32 %v1240, %v1256
      %v1272 = vmul.f32 %v1245, %v1256
      %v1273 = vmul.f32 %v1248, %v1256
      %v1274 = vld [vmem:[%s3] sm:$0x1]
      %v1276 = vlaneseq
      %v1277 = vshrl.u32 %v1276, 7
      %v1278 = vsub.s32 0, %v1277
      %v1279 = vrot.slane %v1274, %v1278
      %v1281 = vadd.f32 %v1258, %v1279
      %v1282 = vadd.f32 %v1259, %v1279
      %v1283 = vadd.f32 %v1260, %v1279
      %v1284 = vadd.f32 %v1261, %v1279
      %v1285 = vadd.f32 %v1262, %v1279
      %v1286 = vadd.f32 %v1263, %v1279
      %v1287 = vadd.f32 %v1264, %v1279
      %v1288 = vadd.f32 %v1265, %v1279
      %v1289 = vadd.f32 %v1266, %v1279
      %v1290 = vadd.f32 %v1267, %v1279
      %v1291 = vadd.f32 %v1268, %v1279
      %v1292 = vadd.f32 %v1269, %v1279
      %v1293 = vadd.f32 %v1270, %v1279
      %v1294 = vadd.f32 %v1271, %v1279
      %v1295 = vadd.f32 %v1272, %v1279
      %v1296 = vadd.f32 %v1273, %v1279
      %v1297 = vld [vmem:[%s369] sm:$0xf]
      %v1298 = vld [vmem:[%s369 + $0x4] sm:$0xf]
      %v1299 = vld [vmem:[%s369 + $0x8] sm:$0xf]
      %v1300 = vld [vmem:[%s369 + $0xc] sm:$0xf]
      %v1301 = vld [vmem:[%s369 + $0x10] sm:$0xf]
      %v1302 = vld [vmem:[%s369 + $0x14] sm:$0xf]
      %v1303 = vld [vmem:[%s369 + $0x18] sm:$0xf]
      %v1304 = vld [vmem:[%s369 + $0x1c] sm:$0xf]
      %v1305 = vld [vmem:[%s369 + $0x20] sm:$0xf]
      %v1306 = vld [vmem:[%s369 + $0x24] sm:$0xf]
      %v1307 = vld [vmem:[%s369 + $0x28] sm:$0xf]
      %v1308 = vld [vmem:[%s369 + $0x2c] sm:$0xf]
      %v1309 = vld [vmem:[%s369 + $0x30] sm:$0xf]
      %v1310 = vld [vmem:[%s369 + $0x34] sm:$0xf]
      %v1311 = vld [vmem:[%s369 + $0x38] sm:$0xf]
      %v1312 = vld [vmem:[%s369 + $0x3c] sm:$0xf]
      %v1313 = vunpack.c.l.bf16 %v1297
      %v1314 = vunpack.c.l.bf16 %v1298
      %v1315 = vunpack.c.l.bf16 %v1299
      %v1316 = vunpack.c.l.bf16 %v1300
      %v1317 = vunpack.c.l.bf16 %v1301
      %v1318 = vunpack.c.l.bf16 %v1302
      %v1319 = vunpack.c.l.bf16 %v1303
      %v1320 = vunpack.c.l.bf16 %v1304
      %v1321 = vunpack.c.l.bf16 %v1305
      %v1322 = vunpack.c.l.bf16 %v1306
      %v1323 = vunpack.c.l.bf16 %v1307
      %v1324 = vunpack.c.l.bf16 %v1308
      %v1325 = vunpack.c.l.bf16 %v1309
      %v1326 = vunpack.c.l.bf16 %v1310
      %v1327 = vunpack.c.l.bf16 %v1311
      %v1328 = vunpack.c.l.bf16 %v1312
      %v1329 = vld [vmem:[%s375] sm:$0xf]
      %v1330 = vld [vmem:[%s375 + $0x4] sm:$0xf]
      %v1331 = vld [vmem:[%s375 + $0x8] sm:$0xf]
      %v1332 = vld [vmem:[%s375 + $0xc] sm:$0xf]
      %v1333 = vld [vmem:[%s375 + $0x10] sm:$0xf]
      %v1334 = vld [vmem:[%s375 + $0x14] sm:$0xf]
      %v1335 = vld [vmem:[%s375 + $0x18] sm:$0xf]
      %v1336 = vld [vmem:[%s375 + $0x1c] sm:$0xf]
      %v1337 = vld [vmem:[%s375 + $0x20] sm:$0xf]
      %v1338 = vld [vmem:[%s375 + $0x24] sm:$0xf]
      %v1339 = vld [vmem:[%s375 + $0x28] sm:$0xf]
      %v1340 = vld [vmem:[%s375 + $0x2c] sm:$0xf]
      %v1341 = vld [vmem:[%s375 + $0x30] sm:$0xf]
      %v1342 = vld [vmem:[%s375 + $0x34] sm:$0xf]
      %v1343 = vld [vmem:[%s375 + $0x38] sm:$0xf]
      %v1344 = vld [vmem:[%s375 + $0x3c] sm:$0xf]
      %v1345 = vunpack.c.l.bf16 %v1329
      %v1346 = vunpack.c.l.bf16 %v1330
      %v1347 = vunpack.c.l.bf16 %v1331
      %v1348 = vunpack.c.l.bf16 %v1332
      %v1349 = vunpack.c.l.bf16 %v1333
      %v1350 = vunpack.c.l.bf16 %v1334
      %v1351 = vunpack.c.l.bf16 %v1335
      %v1352 = vunpack.c.l.bf16 %v1336
      %v1353 = vunpack.c.l.bf16 %v1337
      %v1354 = vunpack.c.l.bf16 %v1338
      %v1355 = vunpack.c.l.bf16 %v1339
      %v1356 = vunpack.c.l.bf16 %v1340
      %v1357 = vunpack.c.l.bf16 %v1341
      %v1358 = vunpack.c.l.bf16 %v1342
      %v1359 = vunpack.c.l.bf16 %v1343
      %v1360 = vunpack.c.l.bf16 %v1344
      %v1361 = vadd.f32 %v1313, %v1345
      %v1362 = vadd.f32 %v1314, %v1346
      %v1363 = vadd.f32 %v1315, %v1347
      %v1364 = vadd.f32 %v1316, %v1348
      %v1365 = vadd.f32 %v1317, %v1349
      %v1366 = vadd.f32 %v1318, %v1350
      %v1367 = vadd.f32 %v1319, %v1351
      %v1368 = vadd.f32 %v1320, %v1352
      %v1369 = vadd.f32 %v1321, %v1353
      %v1370 = vadd.f32 %v1322, %v1354
      %v1371 = vadd.f32 %v1323, %v1355
      %v1372 = vadd.f32 %v1324, %v1356
      %v1373 = vadd.f32 %v1325, %v1357
      %v1374 = vadd.f32 %v1326, %v1358
      %v1375 = vadd.f32 %v1327, %v1359
      %v1376 = vadd.f32 %v1328, %v1360
      %v1377 = vmul.f32 %v1281, %v1361
      %v1378 = vmul.f32 %v1282, %v1362
      %v1379 = vmul.f32 %v1283, %v1363
      %v1380 = vmul.f32 %v1284, %v1364
      %v1381 = vmul.f32 %v1285, %v1365
      %v1382 = vmul.f32 %v1286, %v1366
      %v1383 = vmul.f32 %v1287, %v1367
      %v1384 = vmul.f32 %v1288, %v1368
      %v1385 = vmul.f32 %v1289, %v1369
      %v1386 = vmul.f32 %v1290, %v1370
      %v1387 = vmul.f32 %v1291, %v1371
      %v1388 = vmul.f32 %v1292, %v1372
      %v1389 = vmul.f32 %v1293, %v1373
      %v1390 = vmul.f32 %v1294, %v1374
      %v1391 = vmul.f32 %v1295, %v1375
      %v1392 = vmul.f32 %v1296, %v1376
      %v1393 = vpack.c.bf16 %v1378, %v1377
      %v1394 = vpack.c.bf16 %v1380, %v1379
      %v1395 = vpack.c.bf16 %v1382, %v1381
      %v1396 = vpack.c.bf16 %v1384, %v1383
      %v1397 = vpack.c.bf16 %v1386, %v1385
      %v1398 = vpack.c.bf16 %v1388, %v1387
      %v1399 = vpack.c.bf16 %v1390, %v1389
      %v1400 = vpack.c.bf16 %v1392, %v1391
      %v1401 = vld [vmem:[%s6] sm:$0xf]
      %v1402 = vld [vmem:[%s6 + $0x4] sm:$0xf]
      %v1403 = vld [vmem:[%s6 + $0x8] sm:$0xf]
      %v1404 = vld [vmem:[%s6 + $0xc] sm:$0xf]
      %v1409 = vunpack.c.l.b16 %v1401
      %v1410 = vunpack.c.l.b16 %v1402
      %v1411 = vunpack.c.l.b16 %v1403
      %v1412 = vunpack.c.l.b16 %v1404
      %v1413 = vpack.c.b16 %v1410, %v1409
      %v1414 = vpack.c.b16 %v1412, %v1411
      %vm1417 = vcmask 261120
      %v1419 = vsel %vm1417, %v1393, 0
      %v1422 = vsel %vm1417, %v1394, 0
      %v1425 = vsel %vm1417, %v1395, 0
      %v1428 = vsel %vm1417, %v1396, 0
      %v1431 = vsel %vm1417, %v1397, 0
      %v1434 = vsel %vm1417, %v1398, 0
      %v1437 = vsel %vm1417, %v1399, 0
      %v1440 = vsel %vm1417, %v1400, 0
      %1442 = vmatprep.subr.bf16.mxu0 0
      %1443 = vmatpush1.bf16.msra.mxu0 0
      %1444 = vmatprep.subr.bf16.mxu0 0
      %1445 = vmatpush1.bf16.msra.mxu0 0
      %1446 = vmatprep.subr.bf16.mxu0 0
      %1447 = vmatpush1.bf16.msra.mxu0 0
      %1448 = vmatprep.subr.bf16.mxu0 0
      %1449 = vmatpush1.bf16.msra.mxu0 0
      %1450 = vmatprep.subr.bf16.mxu0 0
      %1451 = vmatpush1.bf16.msra.mxu0 0
      %1452 = vmatprep.subr.bf16.mxu0 0
      %1453 = vmatpush1.bf16.msra.mxu0 0
      %1454 = vmatprep.subr.bf16.mxu0 0
      %1455 = vmatpush1.bf16.msra.mxu0 %v1414
      %1456 = vmatprep.subr.bf16.mxu0 0
      %1457 = vmatpush1.bf16.msra.mxu0 %v1413
      %1458 = vmatprep.subr.bf16.mxu0 0
      %1459 = vmatpush2.bf16.msra.mxu0 0
      %1460 = vmatprep.subr.bf16.mxu0 0
      %1461 = vmatpush2.bf16.msra.mxu0 0
      %1462 = vmatprep.subr.bf16.mxu0 0
      %1463 = vmatpush2.bf16.msra.mxu0 0
      %1464 = vmatprep.subr.bf16.mxu0 0
      %1465 = vmatpush2.bf16.msra.mxu0 0
      %1466 = vmatprep.subr.bf16.mxu0 0
      %1467 = vmatpush2.bf16.msra.mxu0 0
      %1468 = vmatprep.subr.bf16.mxu0 0
      %1469 = vmatpush2.bf16.msra.mxu0 0
      %1470 = vmatprep.subr.bf16.mxu0 0
      %1471 = vmatpush2.bf16.msra.mxu0 0
      %1472 = vmatprep.subr.bf16.mxu0 0
      %1473 = vmatpush2.bf16.msra.mxu0 0
      %1474 = vmatprep.mubr.bf16.mxu0 0
      %1475 = vmatmul.mubr.bf16.gmra.mxu0 %v1419
      %v1476 = vpop.f32.mrf.mxu0
      %v1477 = vadd.f32 0.0, %v1476
      %v1478 = vpop.f32.mrf.mxu0
      %v1479 = vpop.f32.mrf.mxu0
      %v1480 = vadd.f32 0.0, %v1479
      %v1481 = vpop.f32.mrf.mxu0
      %1482 = vmatprep.mubr.bf16.mxu0 0
      %1483 = vmatmul.mubr.bf16.gmra.mxu0 %v1422
      %v1484 = vpop.f32.mrf.mxu0
      %v1485 = vadd.f32 0.0, %v1484
      %v1486 = vpop.f32.mrf.mxu0
      %v1487 = vpop.f32.mrf.mxu0
      %v1488 = vadd.f32 0.0, %v1487
      %v1489 = vpop.f32.mrf.mxu0
      %1490 = vmatprep.mubr.bf16.mxu0 0
      %1491 = vmatmul.mubr.bf16.gmra.mxu0 %v1425
      %v1492 = vpop.f32.mrf.mxu0
      %v1493 = vadd.f32 0.0, %v1492
      %v1494 = vpop.f32.mrf.mxu0
      %v1495 = vpop.f32.mrf.mxu0
      %v1496 = vadd.f32 0.0, %v1495
      %v1497 = vpop.f32.mrf.mxu0
      %1498 = vmatprep.mubr.bf16.mxu0 0
      %1499 = vmatmul.mubr.bf16.gmra.mxu0 %v1428
      %v1500 = vpop.f32.mrf.mxu0
      %v1501 = vadd.f32 0.0, %v1500
      %v1502 = vpop.f32.mrf.mxu0
      %v1503 = vpop.f32.mrf.mxu0
      %v1504 = vadd.f32 0.0, %v1503
      %v1505 = vpop.f32.mrf.mxu0
      %1506 = vmatprep.mubr.bf16.mxu0 0
      %1507 = vmatmul.mubr.bf16.gmra.mxu0 %v1431
      %v1508 = vpop.f32.mrf.mxu0
      %v1509 = vadd.f32 0.0, %v1508
      %v1510 = vpop.f32.mrf.mxu0
      %v1511 = vpop.f32.mrf.mxu0
      %v1512 = vadd.f32 0.0, %v1511
      %v1513 = vpop.f32.mrf.mxu0
      %1514 = vmatprep.mubr.bf16.mxu0 0
      %1515 = vmatmul.mubr.bf16.gmra.mxu0 %v1434
      %v1516 = vpop.f32.mrf.mxu0
      %v1517 = vadd.f32 0.0, %v1516
      %v1518 = vpop.f32.mrf.mxu0
      %v1519 = vpop.f32.mrf.mxu0
      %v1520 = vadd.f32 0.0, %v1519
      %v1521 = vpop.f32.mrf.mxu0
      %1522 = vmatprep.mubr.bf16.mxu0 0
      %1523 = vmatmul.mubr.bf16.gmra.mxu0 %v1437
      %v1524 = vpop.f32.mrf.mxu0
      %v1525 = vadd.f32 0.0, %v1524
      %v1526 = vpop.f32.mrf.mxu0
      %v1527 = vpop.f32.mrf.mxu0
      %v1528 = vadd.f32 0.0, %v1527
      %v1529 = vpop.f32.mrf.mxu0
      %1530 = vmatprep.mubr.bf16.mxu0 0
      %1531 = vmatmul.mubr.bf16.gmra.mxu0 %v1440
      %v1532 = vpop.f32.mrf.mxu0
      %v1533 = vadd.f32 0.0, %v1532
      %v1534 = vpop.f32.mrf.mxu0
      %v1535 = vpop.f32.mrf.mxu0
      %v1536 = vadd.f32 0.0, %v1535
      %v1537 = vpop.f32.mrf.mxu0
      %1538 = vdwg.mxu0
      %v1539 = vld [vmem:[%s7] sm:$0x1]
      %v1541 = vlaneseq
      %v1542 = vshrl.u32 %v1541, 7
      %v1543 = vsub.s32 0, %v1542
      %v1544 = vrot.slane %v1539, %v1543
      %v1546 = vmul.f32 %v1477, %v1544
      %v1547 = vmul.f32 %v1480, %v1544
      %v1548 = vmul.f32 %v1485, %v1544
      %v1549 = vmul.f32 %v1488, %v1544
      %v1550 = vmul.f32 %v1493, %v1544
      %v1551 = vmul.f32 %v1496, %v1544
      %v1552 = vmul.f32 %v1501, %v1544
      %v1553 = vmul.f32 %v1504, %v1544
      %v1554 = vmul.f32 %v1509, %v1544
      %v1555 = vmul.f32 %v1512, %v1544
      %v1556 = vmul.f32 %v1517, %v1544
      %v1557 = vmul.f32 %v1520, %v1544
      %v1558 = vmul.f32 %v1525, %v1544
      %v1559 = vmul.f32 %v1528, %v1544
      %v1560 = vmul.f32 %v1533, %v1544
      %v1561 = vmul.f32 %v1536, %v1544
      %v1562 = vld [vmem:[%s8] sm:$0x1]
      %v1564 = vlaneseq
      %v1565 = vshrl.u32 %v1564, 7
      %v1566 = vsub.s32 0, %v1565
      %v1567 = vrot.slane %v1562, %v1566
      %v1569 = vadd.f32 %v1546, %v1567
      %v1570 = vadd.f32 %v1547, %v1567
      %v1571 = vadd.f32 %v1548, %v1567
      %v1572 = vadd.f32 %v1549, %v1567
      %v1573 = vadd.f32 %v1550, %v1567
      %v1574 = vadd.f32 %v1551, %v1567
      %v1575 = vadd.f32 %v1552, %v1567
      %v1576 = vadd.f32 %v1553, %v1567
      %v1577 = vadd.f32 %v1554, %v1567
      %v1578 = vadd.f32 %v1555, %v1567
      %v1579 = vadd.f32 %v1556, %v1567
      %v1580 = vadd.f32 %v1557, %v1567
      %v1581 = vadd.f32 %v1558, %v1567
      %v1582 = vadd.f32 %v1559, %v1567
      %v1583 = vadd.f32 %v1560, %v1567
      %v1584 = vadd.f32 %v1561, %v1567
      %1585 = vst.msk [vmem:[%s381] sm:$0xff] %vm1417, %v1569
      %1586 = vst.msk [vmem:[%s381 + $0x8] sm:$0xff] %vm1417, %v1570
      %1587 = vst.msk [vmem:[%s381 + $0x10] sm:$0xff] %vm1417, %v1571
      %1588 = vst.msk [vmem:[%s381 + $0x18] sm:$0xff] %vm1417, %v1572
      %1589 = vst.msk [vmem:[%s381 + $0x20] sm:$0xff] %vm1417, %v1573
      %1590 = vst.msk [vmem:[%s381 + $0x28] sm:$0xff] %vm1417, %v1574
      %1591 = vst.msk [vmem:[%s381 + $0x30] sm:$0xff] %vm1417, %v1575
      %1592 = vst.msk [vmem:[%s381 + $0x38] sm:$0xff] %vm1417, %v1576
      %1593 = vst.msk [vmem:[%s381 + $0x40] sm:$0xff] %vm1417, %v1577
      %1594 = vst.msk [vmem:[%s381 + $0x48] sm:$0xff] %vm1417, %v1578
      %1595 = vst.msk [vmem:[%s381 + $0x50] sm:$0xff] %vm1417, %v1579
      %1596 = vst.msk [vmem:[%s381 + $0x58] sm:$0xff] %vm1417, %v1580
      %1597 = vst.msk [vmem:[%s381 + $0x60] sm:$0xff] %vm1417, %v1581
      %1598 = vst.msk [vmem:[%s381 + $0x68] sm:$0xff] %vm1417, %v1582
      %1599 = vst.msk [vmem:[%s381 + $0x70] sm:$0xff] %vm1417, %v1583
      %1600 = vst.msk [vmem:[%s381 + $0x78] sm:$0xff] %vm1417, %v1584
      %s1601 = smul.u32 16, %s20
      %p1602 = scmp.lt.s32.totalorder %s1601, 63
      %s1603 = scalar_select %p1602, %s1601, 63
      %s1604 = smul.addr %s1603, 8
      %s1605 = scalar_lea.vmem %s9, %s1604
      // Predicated region
      $region57: #{_lambda_.3} parent=55 // pred_check
        %p1606 = pneg %p242
      $region58: #{_lambda_.3} parent=55 // pred_check_branch
        %1608 = sbr.rel (%p1606) target = $region60
      $region59: #{_lambda_.3} parent=55 // pred_region
        %s1609 = smul.u32 16, %s20
      $region60: #{_lambda_.3} parent=55 // pred_fallthru
        _
    $region56: #{_lambda_.3} parent=5 // pred_fallthru
      _
    %p1610 = scmp.le.s32.totalorder 2, %s15
    // Predicated region
    $region61: #{_lambda_.3} parent=5 // pred_check
      %p1611 = pneg %p1610
    $region62: #{_lambda_.3} parent=5 // pred_check_branch
      %1613 = sbr.rel (%p1611) target = $region64
    $region63: #{_lambda_.3} parent=5 // pred_region
      %s1614 = ssub.s32 %s15, 2
      // Predicated region
      $region65: #{_lambda_.3} parent=63 // pred_check
        %p1615 = pneg %p248
      $region66: #{_lambda_.3} parent=63 // pred_check_branch
        %1617 = sbr.rel (%p1615) target = $region68
      $region67: #{_lambda_.3} parent=63 // pred_region
        %s1618 = smul.u32 16, %s21
        %p1619 = scmp.lt.s32.totalorder %s1618, 63
        %s1620 = scalar_select %p1619, %s1618, 63
        %s1621 = smul.addr %s1620, 8
        %s1622 = scalar_lea.vmem %s9, %s1621
      $region68: #{_lambda_.3} parent=63 // pred_fallthru
        _
    $region64: #{_lambda_.3} parent=5 // pred_fallthru
      _
  $region6: #{_lambda_.3} parent=0 // loop_footer
    %s19 = sadd.s32 1, %s15
  $region7: #{_lambda_.3} parent=0 // loop_footer_branch
    %14 = sbr.rel target = $region3
  $region8: #{_lambda_.3} parent=0 // loop_exit
    _

</llo_original>
